<compile_context>
chip_gen: v6e
topology: v6e:2x2x1
jax: 0.10.0
libtpu: 0.0.40
codegen_flags: <defaults>
</compile_context>

<pallas_src>
import functools
import numpy as np
import jax
import jax.numpy as jnp
from jax.experimental import pallas as pl
from jax.experimental.pallas import tpu as pltpu

NUM_PARALLEL = 8
HX = 32            # hx_size
FEAT = 128         # width of first Linear


def qnet_kernel(obs_ref, h_ref,
                w1_ref, b1_ref, w2_ref, b2_ref,
                wih_ref, whh_ref, bih_ref, bhh_ref,
                wq_ref, bq_ref,
                q_ref, hout_ref):
    TB, A, P, n_obs = obs_ref.shape
    M = TB * P
    npad = q_ref.shape[-1]
    bf16 = jnp.bfloat16
    f32 = jnp.float32

    for a in range(A):  # static unroll: A is tiny; scheduler overlaps agents
        obs_a = obs_ref[:, a, :, :].reshape(M, n_obs)          # bf16 [M, n_obs]
        h_a = h_ref[:, a, :, :].reshape(M, HX)                 # f32  [M, HX]

        # agent_feature: Linear(n_obs,128) -> ReLU -> Linear(128,32) -> ReLU
        x = jnp.dot(obs_a, w1_ref[a], preferred_element_type=f32) + b1_ref[a]
        x = jnp.maximum(x, 0.0)                                # [M, 128]
        x = jnp.dot(x.astype(bf16), w2_ref[a],
                    preferred_element_type=f32) + b2_ref[a]
        x = jnp.maximum(x, 0.0)                                # [M, HX]

        # GRUCell (PyTorch gate order r,z,n): two K=32 dots, f32 gate math.
        gi = jnp.dot(x.astype(bf16), wih_ref[a],
                     preferred_element_type=f32) + bih_ref[a]      # [M, 3*HX]
        gh = jnp.dot(h_a.astype(bf16), whh_ref[a],
                     preferred_element_type=f32) + bhh_ref[a]      # [M, 3*HX]
        rz = jax.nn.sigmoid(gi[:, :2 * HX] + gh[:, :2 * HX])       # r,z in one pass
        r = rz[:, :HX]
        z = rz[:, HX:2 * HX]
        n = jnp.tanh(gi[:, 2 * HX:] + r * gh[:, 2 * HX:])
        hnew = (1.0 - z) * n + z * h_a                             # f32 [M, HX]

        # q head: small padded width, stored directly in final [B,P,A,npad] layout
        q = jnp.dot(hnew.astype(bf16), wq_ref[a],
                    preferred_element_type=f32) + bq_ref[a]        # [M, npad]
        q_ref[:, :, a, :] = q.reshape(TB, P, npad).astype(q_ref.dtype)

        if a == A - 1:  # only the last agent's hidden survives (list aliasing)
            hout_ref[...] = hnew.reshape(TB, P, HX).astype(hout_ref.dtype)


def qnet_forward(obs, hidden, params, *, n_act, broadcast_next_hidden=True):
    """obs [B,A,P,n_obs] f32, hidden [B,A,P,HX] f32, params from pack_params
       -> (q [B,P,A,n_act] f32, next_hidden [B,A,P,HX] f32)"""
    B, A, P, n_obs = obs.shape
    w1, b1, w2, b2, wih, whh, bih, bhh, wq, bq = params
    weight_ins = (w1, b1, w2, b2, wih, whh, bih, bhh, wq, bq)
    n_act_pad = wq.shape[-1]

    # Halve the dominant activation input DMA; gate math stays f32 (hidden f32).
    obs_bf = obs.astype(jnp.bfloat16)

    # Batch tile: ~4096 rows/step (well under VMEM limits), cdiv grid so an
    # awkward B never collapses to tb=1, and >=2 grid steps whenever B >= 2 so
    # both v7x TensorCores get work on the "parallel" axis.
    target_rows = 4096
    tb = max(1, min(B, max(1, target_rows // P)))
    if B >= 2:
        tb = min(tb, pl.cdiv(B, 2))
    grid = (pl.cdiv(B, tb),)

    def batch_tile(arr):
        nd = arr.ndim
        return pl.BlockSpec((tb,) + tuple(arr.shape[1:]),
                            lambda i, _nd=nd: (i,) + (0,) * (_nd - 1))

    def whole(arr):
        nd = arr.ndim
        return pl.BlockSpec(tuple(arr.shape), lambda i, _nd=nd: (0,) * _nd)

    in_specs = ([batch_tile(obs_bf), batch_tile(hidden)]
                + [whole(w) for w in weight_ins])

    out_shape = (jax.ShapeDtypeStruct((B, P, A, n_act_pad), jnp.float32),
                 jax.ShapeDtypeStruct((B, P, HX), jnp.float32))
    out_specs = [pl.BlockSpec((tb, P, A, n_act_pad), lambda i: (i, 0, 0, 0)),
                 pl.BlockSpec((tb, P, HX), lambda i: (i, 0, 0))]

    M_total = B * P
    flops = 2 * A * M_total * (n_obs * FEAT + FEAT * HX
                               + 2 * HX * 3 * HX + HX * n_act_pad)
    bytes_accessed = int(obs_bf.size * obs_bf.dtype.itemsize
                         + hidden.size * hidden.dtype.itemsize
                         + sum(int(x.size) * x.dtype.itemsize for x in weight_ins)
                         + B * P * A * n_act_pad * 4 + B * P * HX * 4)
    cost = pl.CostEstimate(flops=int(flops),
                           transcendentals=int(A * M_total * 3 * HX),
                           bytes_accessed=bytes_accessed)

    q_pad, h_last = pl.pallas_call(
        qnet_kernel,
        out_shape=out_shape,
        grid_spec=pltpu.PrefetchScalarGridSpec(
            num_scalar_prefetch=0,
            grid=grid,
            in_specs=in_specs,
            out_specs=out_specs),
        compiler_params=pltpu.CompilerParams(
            dimension_semantics=("parallel",)),
        cost_estimate=cost,
    )(obs_bf, hidden, *weight_ins)

    q = q_pad if n_act_pad == n_act else q_pad[..., :n_act]    # [B, P, A, n_act]
    if broadcast_next_hidden:
        # Reproduce the original list-aliasing: every agent slot = last agent's h'.
        next_hidden = jnp.broadcast_to(h_last[:, None], (B, A, P, HX))
    else:
        next_hidden = h_last                                    # [B, P, HX]
    return q, next_hidden


def init_params(key, num_agents, n_obs, n_act):
    """PyTorch-style U(-1/sqrt(fan_in), 1/sqrt(fan_in)) init, stacked over
    agents, weights already transposed for the x @ W convention.
    GRU weights have per-gate columns concatenated as [r | z | n]."""
    def u(k, shape, fan_in):
        bound = 1.0 / np.sqrt(fan_in)
        return jax.random.uniform(k, shape, jnp.float32, -bound, bound)

    A = num_agents
    ks = jax.random.split(key, 10)
    w1 = u(ks[0], (A, n_obs, FEAT), n_obs)
    b1 = u(ks[1], (A, 1, FEAT), n_obs)
    w2 = u(ks[2], (A, FEAT, HX), FEAT)
    b2 = u(ks[3], (A, 1, HX), FEAT)
    wih = u(ks[4], (A, HX, 3 * HX), HX)
    whh = u(ks[5], (A, HX, 3 * HX), HX)
    bih = u(ks[6], (A, 1, 3 * HX), HX)
    bhh = u(ks[7], (A, 1, 3 * HX), HX)
    wq = u(ks[8], (A, HX, n_act), HX)
    bq = u(ks[9], (A, 1, n_act), HX)
    return (w1, b1, w2, b2, wih, whh, bih, bhh, wq, bq)


def pack_params(raw):
    """Pack raw params into the kernel layout:
       - matmul weights cast to bfloat16 (biases stay float32),
       - GRU weights kept unfused/unpadded (two K=32 dots in-kernel),
       - q head padded only up to the next multiple of 8 output lanes."""
    w1, b1, w2, b2, wih, whh, bih, bhh, wq, bq = raw
    A, _, n_act = wq.shape
    n_act_pad = max(8, ((n_act + 7) // 8) * 8)
    if n_act_pad != n_act:
        wq = jnp.concatenate(
            [wq, jnp.zeros((A, HX, n_act_pad - n_act), jnp.float32)], axis=2)
        bq = jnp.concatenate(
            [bq, jnp.zeros((A, 1, n_act_pad - n_act), jnp.float32)], axis=2)
    bf = jnp.bfloat16
    return (w1.astype(bf), b1, w2.astype(bf), b2,
            wih.astype(bf), whh.astype(bf), bih, bhh,
            wq.astype(bf), bq)


def qnet_forward_ref(obs, hidden, raw):
    """Pure-JAX reference of the original per-agent torch math, using the same
    bf16-matmul / f32-elementwise recipe as the kernel."""
    B, A, P, n_obs = obs.shape
    w1, b1, w2, b2, wih, whh, bih, bhh, wq, bq = raw
    bf = jnp.bfloat16

    def mm(x, w):
        return jnp.dot(x.astype(bf), w.astype(bf),
                       preferred_element_type=jnp.float32)

    qs, h_last = [], None
    for a in range(A):
        x = obs[:, a].reshape(B * P, n_obs)
        h = hidden[:, a].reshape(B * P, HX)
        x = jnp.maximum(mm(x, w1[a]) + b1[a], 0.0)
        x = jnp.maximum(mm(x, w2[a]) + b2[a], 0.0)
        gi = mm(x, wih[a]) + bih[a]
        gh = mm(h, whh[a]) + bhh[a]
        r = jax.nn.sigmoid(gi[:, :HX] + gh[:, :HX])
        zg = jax.nn.sigmoid(gi[:, HX:2 * HX] + gh[:, HX:2 * HX])
        n = jnp.tanh(gi[:, 2 * HX:] + r * gh[:, 2 * HX:])
        hnew = (1.0 - zg) * n + zg * h
        q = mm(hnew, wq[a]) + bq[a]
        qs.append(q.reshape(B, P, 1, -1))
        h_last = hnew
    q = jnp.concatenate(qs, axis=2)                                 # [B,P,A,n_act]
    next_hidden = jnp.broadcast_to(
        h_last.reshape(B, P, HX)[:, None], (B, A, P, HX))
    return q, next_hidden


if __name__ == "__main__":
    B, A, P, n_obs, n_act = 2, 3, NUM_PARALLEL, 16, 5

    key = jax.random.PRNGKey(0)
    k_obs, k_hid, k_par = jax.random.split(key, 3)
    obs = jax.random.normal(k_obs, (B, A, P, n_obs), jnp.float32)
    hidden = jax.random.normal(k_hid, (B, A, P, HX), jnp.float32)

    raw = init_params(k_par, A, n_obs, n_act)
    packed = pack_params(raw)

    fwd = jax.jit(functools.partial(qnet_forward, n_act=n_act))
    q, next_hidden = fwd(obs, hidden, packed)
    jax.block_until_ready((q, next_hidden))

    q_ref, h_ref = qnet_forward_ref(obs, hidden, raw)
    # bf16 matmuls -> agreement at bf16 level.
    np.testing.assert_allclose(np.asarray(q), np.asarray(q_ref),
                               atol=1e-2, rtol=1e-2)
    np.testing.assert_allclose(np.asarray(next_hidden), np.asarray(h_ref),
                               atol=1e-2, rtol=1e-2)

    assert q.shape == (B, P, A, n_act)
    assert next_hidden.shape == (B, A, P, HX)
    print("KERNEL_OK")
</pallas_src>

<mosaic_0001>
module attributes {stable_mosaic.version = 11 : i64} {
  func.func @qnet_kernel(%arg0: i32, %arg1: memref<1x3x8x16xbf16, #tpu.memory_space<vmem>>, %arg2: memref<1x3x8x32xf32, #tpu.memory_space<vmem>>, %arg3: memref<3x16x128xbf16, #tpu.memory_space<vmem>>, %arg4: memref<3x1x128xf32, #tpu.memory_space<vmem>>, %arg5: memref<3x128x32xbf16, #tpu.memory_space<vmem>>, %arg6: memref<3x1x32xf32, #tpu.memory_space<vmem>>, %arg7: memref<3x32x96xbf16, #tpu.memory_space<vmem>>, %arg8: memref<3x32x96xbf16, #tpu.memory_space<vmem>>, %arg9: memref<3x1x96xf32, #tpu.memory_space<vmem>>, %arg10: memref<3x1x96xf32, #tpu.memory_space<vmem>>, %arg11: memref<3x32x8xbf16, #tpu.memory_space<vmem>>, %arg12: memref<3x1x8xf32, #tpu.memory_space<vmem>>, %arg13: memref<1x8x3x8xf32, #tpu.memory_space<vmem>>, %arg14: memref<1x8x32xf32, #tpu.memory_space<vmem>>) attributes {dimension_semantics = [#tpu.dimension_semantics<parallel>], iteration_bounds = array<i64: 2>, scalar_prefetch = 0 : i64, scratch_operands = 0 : i64, tpu.core_type = #tpu.core_type<tc>, window_params = [{transform_indices = @transform_0, window_bounds = array<i64: 1, 3, 8, 16>}, {transform_indices = @transform_1, window_bounds = array<i64: 1, 3, 8, 32>}, {pipeline_mode = #tpu.pipeline_mode<synchronous>, transform_indices = @transform_2, window_bounds = array<i64: 3, 16, 128>}, {pipeline_mode = #tpu.pipeline_mode<synchronous>, transform_indices = @transform_3, window_bounds = array<i64: 3, 1, 128>}, {pipeline_mode = #tpu.pipeline_mode<synchronous>, transform_indices = @transform_4, window_bounds = array<i64: 3, 128, 32>}, {pipeline_mode = #tpu.pipeline_mode<synchronous>, transform_indices = @transform_5, window_bounds = array<i64: 3, 1, 32>}, {pipeline_mode = #tpu.pipeline_mode<synchronous>, transform_indices = @transform_6, window_bounds = array<i64: 3, 32, 96>}, {pipeline_mode = #tpu.pipeline_mode<synchronous>, transform_indices = @transform_7, window_bounds = array<i64: 3, 32, 96>}, {pipeline_mode = #tpu.pipeline_mode<synchronous>, transform_indices = @transform_8, window_bounds = array<i64: 3, 1, 96>}, {pipeline_mode = #tpu.pipeline_mode<synchronous>, transform_indices = @transform_9, window_bounds = array<i64: 3, 1, 96>}, {pipeline_mode = #tpu.pipeline_mode<synchronous>, transform_indices = @transform_10, window_bounds = array<i64: 3, 32, 8>}, {pipeline_mode = #tpu.pipeline_mode<synchronous>, transform_indices = @transform_11, window_bounds = array<i64: 3, 1, 8>}, {transform_indices = @transform_12, window_bounds = array<i64: 1, 8, 3, 8>}, {transform_indices = @transform_13, window_bounds = array<i64: 1, 8, 32>}]} {
    %c0 = arith.constant 0 : index
    %c0_0 = arith.constant 0 : index
    %c0_1 = arith.constant 0 : index
    %c0_2 = arith.constant 0 : index
    %0 = vector.load %arg1[%c0, %c0_0, %c0_1, %c0_2] : memref<1x3x8x16xbf16, #tpu.memory_space<vmem>>, vector<1x1x8x16xbf16>
    %1 = vector.shape_cast %0 : vector<1x1x8x16xbf16> to vector<1x8x16xbf16>
    %2 = vector.shape_cast %1 : vector<1x8x16xbf16> to vector<8x16xbf16>
    %c0_3 = arith.constant 0 : index
    %c0_4 = arith.constant 0 : index
    %c0_5 = arith.constant 0 : index
    %c0_6 = arith.constant 0 : index
    %3 = vector.load %arg2[%c0_3, %c0_4, %c0_5, %c0_6] : memref<1x3x8x32xf32, #tpu.memory_space<vmem>>, vector<1x1x8x32xf32>
    %4 = vector.shape_cast %3 : vector<1x1x8x32xf32> to vector<1x8x32xf32>
    %5 = vector.shape_cast %4 : vector<1x8x32xf32> to vector<8x32xf32>
    %c0_7 = arith.constant 0 : index
    %c0_8 = arith.constant 0 : index
    %c0_9 = arith.constant 0 : index
    %6 = vector.load %arg3[%c0_7, %c0_8, %c0_9] : memref<3x16x128xbf16, #tpu.memory_space<vmem>>, vector<1x16x128xbf16>
    %7 = vector.shape_cast %6 : vector<1x16x128xbf16> to vector<16x128xbf16>
    %cst = arith.constant dense<0.000000e+00> : vector<8x128xf32>
    %8 = tpu.matmul %2, %7, %cst {dimension_numbers = #tpu.dot_dimension_numbers<[1], [0], [0], [1], [0, 0, 1, 1], [], []>} : vector<8x16xbf16>, vector<16x128xbf16>, vector<8x128xf32> -> vector<8x128xf32>
    %c0_10 = arith.constant 0 : index
    %c0_11 = arith.constant 0 : index
    %c0_12 = arith.constant 0 : index
    %9 = vector.load %arg4[%c0_10, %c0_11, %c0_12] : memref<3x1x128xf32, #tpu.memory_space<vmem>>, vector<1x1x128xf32>
    %10 = vector.shape_cast %9 : vector<1x1x128xf32> to vector<1x128xf32>
    %11 = vector.broadcast %10 : vector<1x128xf32> to vector<8x128xf32>
    %12 = arith.addf %8, %11 : vector<8x128xf32>
    %cst_13 = arith.constant 0.000000e+00 : f32
    %13 = vector.broadcast %cst_13 : f32 to vector<8x128xf32>
    %14 = arith.maximumf %12, %13 : vector<8x128xf32>
    %15 = arith.truncf %14 : vector<8x128xf32> to vector<8x128xbf16>
    %c0_14 = arith.constant 0 : index
    %c0_15 = arith.constant 0 : index
    %c0_16 = arith.constant 0 : index
    %16 = vector.load %arg5[%c0_14, %c0_15, %c0_16] : memref<3x128x32xbf16, #tpu.memory_space<vmem>>, vector<1x128x32xbf16>
    %17 = vector.shape_cast %16 : vector<1x128x32xbf16> to vector<128x32xbf16>
    %cst_17 = arith.constant dense<0.000000e+00> : vector<8x32xf32>
    %18 = tpu.matmul %15, %17, %cst_17 {dimension_numbers = #tpu.dot_dimension_numbers<[1], [0], [0], [1], [0, 0, 1, 1], [], []>} : vector<8x128xbf16>, vector<128x32xbf16>, vector<8x32xf32> -> vector<8x32xf32>
    %c0_18 = arith.constant 0 : index
    %c0_19 = arith.constant 0 : index
    %c0_20 = arith.constant 0 : index
    %19 = vector.load %arg6[%c0_18, %c0_19, %c0_20] : memref<3x1x32xf32, #tpu.memory_space<vmem>>, vector<1x1x32xf32>
    %20 = vector.shape_cast %19 : vector<1x1x32xf32> to vector<1x32xf32>
    %21 = vector.broadcast %20 : vector<1x32xf32> to vector<8x32xf32>
    %22 = arith.addf %18, %21 : vector<8x32xf32>
    %cst_21 = arith.constant 0.000000e+00 : f32
    %23 = vector.broadcast %cst_21 : f32 to vector<8x32xf32>
    %24 = arith.maximumf %22, %23 : vector<8x32xf32>
    %25 = arith.truncf %24 : vector<8x32xf32> to vector<8x32xbf16>
    %c0_22 = arith.constant 0 : index
    %c0_23 = arith.constant 0 : index
    %c0_24 = arith.constant 0 : index
    %26 = vector.load %arg7[%c0_22, %c0_23, %c0_24] : memref<3x32x96xbf16, #tpu.memory_space<vmem>>, vector<1x32x96xbf16>
    %27 = vector.shape_cast %26 : vector<1x32x96xbf16> to vector<32x96xbf16>
    %cst_25 = arith.constant dense<0.000000e+00> : vector<8x96xf32>
    %28 = tpu.matmul %25, %27, %cst_25 {dimension_numbers = #tpu.dot_dimension_numbers<[1], [0], [0], [1], [0, 0, 1, 1], [], []>} : vector<8x32xbf16>, vector<32x96xbf16>, vector<8x96xf32> -> vector<8x96xf32>
    %c0_26 = arith.constant 0 : index
    %c0_27 = arith.constant 0 : index
    %c0_28 = arith.constant 0 : index
    %29 = vector.load %arg9[%c0_26, %c0_27, %c0_28] : memref<3x1x96xf32, #tpu.memory_space<vmem>>, vector<1x1x96xf32>
    %30 = vector.shape_cast %29 : vector<1x1x96xf32> to vector<1x96xf32>
    %31 = vector.broadcast %30 : vector<1x96xf32> to vector<8x96xf32>
    %32 = arith.addf %28, %31 : vector<8x96xf32>
    %33 = arith.truncf %5 : vector<8x32xf32> to vector<8x32xbf16>
    %c0_29 = arith.constant 0 : index
    %c0_30 = arith.constant 0 : index
    %c0_31 = arith.constant 0 : index
    %34 = vector.load %arg8[%c0_29, %c0_30, %c0_31] : memref<3x32x96xbf16, #tpu.memory_space<vmem>>, vector<1x32x96xbf16>
    %35 = vector.shape_cast %34 : vector<1x32x96xbf16> to vector<32x96xbf16>
    %cst_32 = arith.constant dense<0.000000e+00> : vector<8x96xf32>
    %36 = tpu.matmul %33, %35, %cst_32 {dimension_numbers = #tpu.dot_dimension_numbers<[1], [0], [0], [1], [0, 0, 1, 1], [], []>} : vector<8x32xbf16>, vector<32x96xbf16>, vector<8x96xf32> -> vector<8x96xf32>
    %c0_33 = arith.constant 0 : index
    %c0_34 = arith.constant 0 : index
    %c0_35 = arith.constant 0 : index
    %37 = vector.load %arg10[%c0_33, %c0_34, %c0_35] : memref<3x1x96xf32, #tpu.memory_space<vmem>>, vector<1x1x96xf32>
    %38 = vector.shape_cast %37 : vector<1x1x96xf32> to vector<1x96xf32>
    %39 = vector.broadcast %38 : vector<1x96xf32> to vector<8x96xf32>
    %40 = arith.addf %36, %39 : vector<8x96xf32>
    %41 = vector.extract_strided_slice %32 {offsets = [0, 0], sizes = [8, 64], strides = [1, 1]} : vector<8x96xf32> to vector<8x64xf32>
    %42 = vector.extract_strided_slice %40 {offsets = [0, 0], sizes = [8, 64], strides = [1, 1]} : vector<8x96xf32> to vector<8x64xf32>
    %43 = arith.addf %41, %42 : vector<8x64xf32>
    %44 = arith.negf %43 : vector<8x64xf32>
    %45 = math.exp %44 : vector<8x64xf32>
    %cst_36 = arith.constant 1.000000e+00 : f32
    %46 = vector.broadcast %cst_36 : f32 to vector<8x64xf32>
    %47 = arith.addf %46, %45 : vector<8x64xf32>
    %48 = arith.divf %46, %47 : vector<8x64xf32>
    %49 = vector.extract_strided_slice %48 {offsets = [0, 0], sizes = [8, 32], strides = [1, 1]} : vector<8x64xf32> to vector<8x32xf32>
    %50 = vector.extract_strided_slice %48 {offsets = [0, 32], sizes = [8, 32], strides = [1, 1]} : vector<8x64xf32> to vector<8x32xf32>
    %51 = vector.extract_strided_slice %32 {offsets = [0, 64], sizes = [8, 32], strides = [1, 1]} : vector<8x96xf32> to vector<8x32xf32>
    %52 = vector.extract_strided_slice %40 {offsets = [0, 64], sizes = [8, 32], strides = [1, 1]} : vector<8x96xf32> to vector<8x32xf32>
    %53 = arith.mulf %49, %52 : vector<8x32xf32>
    %54 = arith.addf %51, %53 : vector<8x32xf32>
    %55 = math.tanh %54 : vector<8x32xf32>
    %cst_37 = arith.constant 1.000000e+00 : f32
    %56 = vector.broadcast %cst_37 : f32 to vector<8x32xf32>
    %57 = arith.subf %56, %50 : vector<8x32xf32>
    %58 = arith.mulf %57, %55 : vector<8x32xf32>
    %59 = arith.mulf %50, %5 : vector<8x32xf32>
    %60 = arith.addf %58, %59 : vector<8x32xf32>
    %61 = arith.truncf %60 : vector<8x32xf32> to vector<8x32xbf16>
    %c0_38 = arith.constant 0 : index
    %c0_39 = arith.constant 0 : index
    %c0_40 = arith.constant 0 : index
    %62 = vector.load %arg11[%c0_38, %c0_39, %c0_40] : memref<3x32x8xbf16, #tpu.memory_space<vmem>>, vector<1x32x8xbf16>
    %63 = vector.shape_cast %62 : vector<1x32x8xbf16> to vector<32x8xbf16>
    %cst_41 = arith.constant dense<0.000000e+00> : vector<8x8xf32>
    %64 = tpu.matmul %61, %63, %cst_41 {dimension_numbers = #tpu.dot_dimension_numbers<[1], [0], [0], [1], [0, 0, 1, 1], [], []>} : vector<8x32xbf16>, vector<32x8xbf16>, vector<8x8xf32> -> vector<8x8xf32>
    %c0_42 = arith.constant 0 : index
    %c0_43 = arith.constant 0 : index
    %c0_44 = arith.constant 0 : index
    %65 = vector.load %arg12[%c0_42, %c0_43, %c0_44] : memref<3x1x8xf32, #tpu.memory_space<vmem>>, vector<1x1x8xf32>
    %66 = vector.shape_cast %65 : vector<1x1x8xf32> to vector<1x8xf32>
    %67 = vector.broadcast %66 : vector<1x8xf32> to vector<8x8xf32>
    %68 = arith.addf %64, %67 : vector<8x8xf32>
    %69 = vector.shape_cast %68 : vector<8x8xf32> to vector<1x8x8xf32>
    %c0_45 = arith.constant 0 : index
    %c0_46 = arith.constant 0 : index
    %c0_47 = arith.constant 0 : index
    %c0_48 = arith.constant 0 : index
    %70 = vector.load %arg13[%c0_45, %c0_46, %c0_47, %c0_48] : memref<1x8x3x8xf32, #tpu.memory_space<vmem>>, vector<1x8x1x8xf32>
    %71 = vector.shape_cast %70 : vector<1x8x1x8xf32> to vector<1x8x8xf32>
    %72 = vector.shape_cast %69 : vector<1x8x8xf32> to vector<1x8x1x8xf32>
    tpu.vector_store %arg13[%c0_45, %c0_46, %c0_47, %c0_48], %72 {strides = array<i32>} : memref<1x8x3x8xf32, #tpu.memory_space<vmem>>, vector<1x8x1x8xf32>,
    %c0_49 = arith.constant 0 : index
    %c1 = arith.constant 1 : index
    %c0_50 = arith.constant 0 : index
    %c0_51 = arith.constant 0 : index
    %73 = vector.load %arg1[%c0_49, %c1, %c0_50, %c0_51] : memref<1x3x8x16xbf16, #tpu.memory_space<vmem>>, vector<1x1x8x16xbf16>
    %74 = vector.shape_cast %73 : vector<1x1x8x16xbf16> to vector<1x8x16xbf16>
    %75 = vector.shape_cast %74 : vector<1x8x16xbf16> to vector<8x16xbf16>
    %c0_52 = arith.constant 0 : index
    %c1_53 = arith.constant 1 : index
    %c0_54 = arith.constant 0 : index
    %c0_55 = arith.constant 0 : index
    %76 = vector.load %arg2[%c0_52, %c1_53, %c0_54, %c0_55] : memref<1x3x8x32xf32, #tpu.memory_space<vmem>>, vector<1x1x8x32xf32>
    %77 = vector.shape_cast %76 : vector<1x1x8x32xf32> to vector<1x8x32xf32>
    %78 = vector.shape_cast %77 : vector<1x8x32xf32> to vector<8x32xf32>
    %c1_56 = arith.constant 1 : index
    %c0_57 = arith.constant 0 : index
    %c0_58 = arith.constant 0 : index
    %79 = vector.load %arg3[%c1_56, %c0_57, %c0_58] : memref<3x16x128xbf16, #tpu.memory_space<vmem>>, vector<1x16x128xbf16>
    %80 = vector.shape_cast %79 : vector<1x16x128xbf16> to vector<16x128xbf16>
    %cst_59 = arith.constant dense<0.000000e+00> : vector<8x128xf32>
    %81 = tpu.matmul %75, %80, %cst_59 {dimension_numbers = #tpu.dot_dimension_numbers<[1], [0], [0], [1], [0, 0, 1, 1], [], []>} : vector<8x16xbf16>, vector<16x128xbf16>, vector<8x128xf32> -> vector<8x128xf32>
    %c1_60 = arith.constant 1 : index
    %c0_61 = arith.constant 0 : index
    %c0_62 = arith.constant 0 : index
    %82 = vector.load %arg4[%c1_60, %c0_61, %c0_62] : memref<3x1x128xf32, #tpu.memory_space<vmem>>, vector<1x1x128xf32>
    %83 = vector.shape_cast %82 : vector<1x1x128xf32> to vector<1x128xf32>
    %84 = vector.broadcast %83 : vector<1x128xf32> to vector<8x128xf32>
    %85 = arith.addf %81, %84 : vector<8x128xf32>
    %cst_63 = arith.constant 0.000000e+00 : f32
    %86 = vector.broadcast %cst_63 : f32 to vector<8x128xf32>
    %87 = arith.maximumf %85, %86 : vector<8x128xf32>
    %88 = arith.truncf %87 : vector<8x128xf32> to vector<8x128xbf16>
    %c1_64 = arith.constant 1 : index
    %c0_65 = arith.constant 0 : index
    %c0_66 = arith.constant 0 : index
    %89 = vector.load %arg5[%c1_64, %c0_65, %c0_66] : memref<3x128x32xbf16, #tpu.memory_space<vmem>>, vector<1x128x32xbf16>
    %90 = vector.shape_cast %89 : vector<1x128x32xbf16> to vector<128x32xbf16>
    %cst_67 = arith.constant dense<0.000000e+00> : vector<8x32xf32>
    %91 = tpu.matmul %88, %90, %cst_67 {dimension_numbers = #tpu.dot_dimension_numbers<[1], [0], [0], [1], [0, 0, 1, 1], [], []>} : vector<8x128xbf16>, vector<128x32xbf16>, vector<8x32xf32> -> vector<8x32xf32>
    %c1_68 = arith.constant 1 : index
    %c0_69 = arith.constant 0 : index
    %c0_70 = arith.constant 0 : index
    %92 = vector.load %arg6[%c1_68, %c0_69, %c0_70] : memref<3x1x32xf32, #tpu.memory_space<vmem>>, vector<1x1x32xf32>
    %93 = vector.shape_cast %92 : vector<1x1x32xf32> to vector<1x32xf32>
    %94 = vector.broadcast %93 : vector<1x32xf32> to vector<8x32xf32>
    %95 = arith.addf %91, %94 : vector<8x32xf32>
    %cst_71 = arith.constant 0.000000e+00 : f32
    %96 = vector.broadcast %cst_71 : f32 to vector<8x32xf32>
    %97 = arith.maximumf %95, %96 : vector<8x32xf32>
    %98 = arith.truncf %97 : vector<8x32xf32> to vector<8x32xbf16>
    %c1_72 = arith.constant 1 : index
    %c0_73 = arith.constant 0 : index
    %c0_74 = arith.constant 0 : index
    %99 = vector.load %arg7[%c1_72, %c0_73, %c0_74] : memref<3x32x96xbf16, #tpu.memory_space<vmem>>, vector<1x32x96xbf16>
    %100 = vector.shape_cast %99 : vector<1x32x96xbf16> to vector<32x96xbf16>
    %cst_75 = arith.constant dense<0.000000e+00> : vector<8x96xf32>
    %101 = tpu.matmul %98, %100, %cst_75 {dimension_numbers = #tpu.dot_dimension_numbers<[1], [0], [0], [1], [0, 0, 1, 1], [], []>} : vector<8x32xbf16>, vector<32x96xbf16>, vector<8x96xf32> -> vector<8x96xf32>
    %c1_76 = arith.constant 1 : index
    %c0_77 = arith.constant 0 : index
    %c0_78 = arith.constant 0 : index
    %102 = vector.load %arg9[%c1_76, %c0_77, %c0_78] : memref<3x1x96xf32, #tpu.memory_space<vmem>>, vector<1x1x96xf32>
    %103 = vector.shape_cast %102 : vector<1x1x96xf32> to vector<1x96xf32>
    %104 = vector.broadcast %103 : vector<1x96xf32> to vector<8x96xf32>
    %105 = arith.addf %101, %104 : vector<8x96xf32>
    %106 = arith.truncf %78 : vector<8x32xf32> to vector<8x32xbf16>
    %c1_79 = arith.constant 1 : index
    %c0_80 = arith.constant 0 : index
    %c0_81 = arith.constant 0 : index
    %107 = vector.load %arg8[%c1_79, %c0_80, %c0_81] : memref<3x32x96xbf16, #tpu.memory_space<vmem>>, vector<1x32x96xbf16>
    %108 = vector.shape_cast %107 : vector<1x32x96xbf16> to vector<32x96xbf16>
    %cst_82 = arith.constant dense<0.000000e+00> : vector<8x96xf32>
    %109 = tpu.matmul %106, %108, %cst_82 {dimension_numbers = #tpu.dot_dimension_numbers<[1], [0], [0], [1], [0, 0, 1, 1], [], []>} : vector<8x32xbf16>, vector<32x96xbf16>, vector<8x96xf32> -> vector<8x96xf32>
    %c1_83 = arith.constant 1 : index
    %c0_84 = arith.constant 0 : index
    %c0_85 = arith.constant 0 : index
    %110 = vector.load %arg10[%c1_83, %c0_84, %c0_85] : memref<3x1x96xf32, #tpu.memory_space<vmem>>, vector<1x1x96xf32>
    %111 = vector.shape_cast %110 : vector<1x1x96xf32> to vector<1x96xf32>
    %112 = vector.broadcast %111 : vector<1x96xf32> to vector<8x96xf32>
    %113 = arith.addf %109, %112 : vector<8x96xf32>
    %114 = vector.extract_strided_slice %105 {offsets = [0, 0], sizes = [8, 64], strides = [1, 1]} : vector<8x96xf32> to vector<8x64xf32>
    %115 = vector.extract_strided_slice %113 {offsets = [0, 0], sizes = [8, 64], strides = [1, 1]} : vector<8x96xf32> to vector<8x64xf32>
    %116 = arith.addf %114, %115 : vector<8x64xf32>
    %117 = arith.negf %116 : vector<8x64xf32>
    %118 = math.exp %117 : vector<8x64xf32>
    %cst_86 = arith.constant 1.000000e+00 : f32
    %119 = vector.broadcast %cst_86 : f32 to vector<8x64xf32>
    %120 = arith.addf %119, %118 : vector<8x64xf32>
    %121 = arith.divf %119, %120 : vector<8x64xf32>
    %122 = vector.extract_strided_slice %121 {offsets = [0, 0], sizes = [8, 32], strides = [1, 1]} : vector<8x64xf32> to vector<8x32xf32>
    %123 = vector.extract_strided_slice %121 {offsets = [0, 32], sizes = [8, 32], strides = [1, 1]} : vector<8x64xf32> to vector<8x32xf32>
    %124 = vector.extract_strided_slice %105 {offsets = [0, 64], sizes = [8, 32], strides = [1, 1]} : vector<8x96xf32> to vector<8x32xf32>
    %125 = vector.extract_strided_slice %113 {offsets = [0, 64], sizes = [8, 32], strides = [1, 1]} : vector<8x96xf32> to vector<8x32xf32>
    %126 = arith.mulf %122, %125 : vector<8x32xf32>
    %127 = arith.addf %124, %126 : vector<8x32xf32>
    %128 = math.tanh %127 : vector<8x32xf32>
    %cst_87 = arith.constant 1.000000e+00 : f32
    %129 = vector.broadcast %cst_87 : f32 to vector<8x32xf32>
    %130 = arith.subf %129, %123 : vector<8x32xf32>
    %131 = arith.mulf %130, %128 : vector<8x32xf32>
    %132 = arith.mulf %123, %78 : vector<8x32xf32>
    %133 = arith.addf %131, %132 : vector<8x32xf32>
    %134 = arith.truncf %133 : vector<8x32xf32> to vector<8x32xbf16>
    %c1_88 = arith.constant 1 : index
    %c0_89 = arith.constant 0 : index
    %c0_90 = arith.constant 0 : index
    %135 = vector.load %arg11[%c1_88, %c0_89, %c0_90] : memref<3x32x8xbf16, #tpu.memory_space<vmem>>, vector<1x32x8xbf16>
    %136 = vector.shape_cast %135 : vector<1x32x8xbf16> to vector<32x8xbf16>
    %cst_91 = arith.constant dense<0.000000e+00> : vector<8x8xf32>
    %137 = tpu.matmul %134, %136, %cst_91 {dimension_numbers = #tpu.dot_dimension_numbers<[1], [0], [0], [1], [0, 0, 1, 1], [], []>} : vector<8x32xbf16>, vector<32x8xbf16>, vector<8x8xf32> -> vector<8x8xf32>
    %c1_92 = arith.constant 1 : index
    %c0_93 = arith.constant 0 : index
    %c0_94 = arith.constant 0 : index
    %138 = vector.load %arg12[%c1_92, %c0_93, %c0_94] : memref<3x1x8xf32, #tpu.memory_space<vmem>>, vector<1x1x8xf32>
    %139 = vector.shape_cast %138 : vector<1x1x8xf32> to vector<1x8xf32>
    %140 = vector.broadcast %139 : vector<1x8xf32> to vector<8x8xf32>
    %141 = arith.addf %137, %140 : vector<8x8xf32>
    %142 = vector.shape_cast %141 : vector<8x8xf32> to vector<1x8x8xf32>
    %c0_95 = arith.constant 0 : index
    %c0_96 = arith.constant 0 : index
    %c1_97 = arith.constant 1 : index
    %c0_98 = arith.constant 0 : index
    %143 = vector.load %arg13[%c0_95, %c0_96, %c1_97, %c0_98] : memref<1x8x3x8xf32, #tpu.memory_space<vmem>>, vector<1x8x1x8xf32>
    %144 = vector.shape_cast %143 : vector<1x8x1x8xf32> to vector<1x8x8xf32>
    %145 = vector.shape_cast %142 : vector<1x8x8xf32> to vector<1x8x1x8xf32>
    tpu.vector_store %arg13[%c0_95, %c0_96, %c1_97, %c0_98], %145 {strides = array<i32>} : memref<1x8x3x8xf32, #tpu.memory_space<vmem>>, vector<1x8x1x8xf32>,
    %c0_99 = arith.constant 0 : index
    %c2 = arith.constant 2 : index
    %c0_100 = arith.constant 0 : index
    %c0_101 = arith.constant 0 : index
    %146 = vector.load %arg1[%c0_99, %c2, %c0_100, %c0_101] : memref<1x3x8x16xbf16, #tpu.memory_space<vmem>>, vector<1x1x8x16xbf16>
    %147 = vector.shape_cast %146 : vector<1x1x8x16xbf16> to vector<1x8x16xbf16>
    %148 = vector.shape_cast %147 : vector<1x8x16xbf16> to vector<8x16xbf16>
    %c0_102 = arith.constant 0 : index
    %c2_103 = arith.constant 2 : index
    %c0_104 = arith.constant 0 : index
    %c0_105 = arith.constant 0 : index
    %149 = vector.load %arg2[%c0_102, %c2_103, %c0_104, %c0_105] : memref<1x3x8x32xf32, #tpu.memory_space<vmem>>, vector<1x1x8x32xf32>
    %150 = vector.shape_cast %149 : vector<1x1x8x32xf32> to vector<1x8x32xf32>
    %151 = vector.shape_cast %150 : vector<1x8x32xf32> to vector<8x32xf32>
    %c2_106 = arith.constant 2 : index
    %c0_107 = arith.constant 0 : index
    %c0_108 = arith.constant 0 : index
    %152 = vector.load %arg3[%c2_106, %c0_107, %c0_108] : memref<3x16x128xbf16, #tpu.memory_space<vmem>>, vector<1x16x128xbf16>
    %153 = vector.shape_cast %152 : vector<1x16x128xbf16> to vector<16x128xbf16>
    %cst_109 = arith.constant dense<0.000000e+00> : vector<8x128xf32>
    %154 = tpu.matmul %148, %153, %cst_109 {dimension_numbers = #tpu.dot_dimension_numbers<[1], [0], [0], [1], [0, 0, 1, 1], [], []>} : vector<8x16xbf16>, vector<16x128xbf16>, vector<8x128xf32> -> vector<8x128xf32>
    %c2_110 = arith.constant 2 : index
    %c0_111 = arith.constant 0 : index
    %c0_112 = arith.constant 0 : index
    %155 = vector.load %arg4[%c2_110, %c0_111, %c0_112] : memref<3x1x128xf32, #tpu.memory_space<vmem>>, vector<1x1x128xf32>
    %156 = vector.shape_cast %155 : vector<1x1x128xf32> to vector<1x128xf32>
    %157 = vector.broadcast %156 : vector<1x128xf32> to vector<8x128xf32>
    %158 = arith.addf %154, %157 : vector<8x128xf32>
    %cst_113 = arith.constant 0.000000e+00 : f32
    %159 = vector.broadcast %cst_113 : f32 to vector<8x128xf32>
    %160 = arith.maximumf %158, %159 : vector<8x128xf32>
    %161 = arith.truncf %160 : vector<8x128xf32> to vector<8x128xbf16>
    %c2_114 = arith.constant 2 : index
    %c0_115 = arith.constant 0 : index
    %c0_116 = arith.constant 0 : index
    %162 = vector.load %arg5[%c2_114, %c0_115, %c0_116] : memref<3x128x32xbf16, #tpu.memory_space<vmem>>, vector<1x128x32xbf16>
    %163 = vector.shape_cast %162 : vector<1x128x32xbf16> to vector<128x32xbf16>
    %cst_117 = arith.constant dense<0.000000e+00> : vector<8x32xf32>
    %164 = tpu.matmul %161, %163, %cst_117 {dimension_numbers = #tpu.dot_dimension_numbers<[1], [0], [0], [1], [0, 0, 1, 1], [], []>} : vector<8x128xbf16>, vector<128x32xbf16>, vector<8x32xf32> -> vector<8x32xf32>
    %c2_118 = arith.constant 2 : index
    %c0_119 = arith.constant 0 : index
    %c0_120 = arith.constant 0 : index
    %165 = vector.load %arg6[%c2_118, %c0_119, %c0_120] : memref<3x1x32xf32, #tpu.memory_space<vmem>>, vector<1x1x32xf32>
    %166 = vector.shape_cast %165 : vector<1x1x32xf32> to vector<1x32xf32>
    %167 = vector.broadcast %166 : vector<1x32xf32> to vector<8x32xf32>
    %168 = arith.addf %164, %167 : vector<8x32xf32>
    %cst_121 = arith.constant 0.000000e+00 : f32
    %169 = vector.broadcast %cst_121 : f32 to vector<8x32xf32>
    %170 = arith.maximumf %168, %169 : vector<8x32xf32>
    %171 = arith.truncf %170 : vector<8x32xf32> to vector<8x32xbf16>
    %c2_122 = arith.constant 2 : index
    %c0_123 = arith.constant 0 : index
    %c0_124 = arith.constant 0 : index
    %172 = vector.load %arg7[%c2_122, %c0_123, %c0_124] : memref<3x32x96xbf16, #tpu.memory_space<vmem>>, vector<1x32x96xbf16>
    %173 = vector.shape_cast %172 : vector<1x32x96xbf16> to vector<32x96xbf16>
    %cst_125 = arith.constant dense<0.000000e+00> : vector<8x96xf32>
    %174 = tpu.matmul %171, %173, %cst_125 {dimension_numbers = #tpu.dot_dimension_numbers<[1], [0], [0], [1], [0, 0, 1, 1], [], []>} : vector<8x32xbf16>, vector<32x96xbf16>, vector<8x96xf32> -> vector<8x96xf32>
    %c2_126 = arith.constant 2 : index
    %c0_127 = arith.constant 0 : index
    %c0_128 = arith.constant 0 : index
    %175 = vector.load %arg9[%c2_126, %c0_127, %c0_128] : memref<3x1x96xf32, #tpu.memory_space<vmem>>, vector<1x1x96xf32>
    %176 = vector.shape_cast %175 : vector<1x1x96xf32> to vector<1x96xf32>
    %177 = vector.broadcast %176 : vector<1x96xf32> to vector<8x96xf32>
    %178 = arith.addf %174, %177 : vector<8x96xf32>
    %179 = arith.truncf %151 : vector<8x32xf32> to vector<8x32xbf16>
    %c2_129 = arith.constant 2 : index
    %c0_130 = arith.constant 0 : index
    %c0_131 = arith.constant 0 : index
    %180 = vector.load %arg8[%c2_129, %c0_130, %c0_131] : memref<3x32x96xbf16, #tpu.memory_space<vmem>>, vector<1x32x96xbf16>
    %181 = vector.shape_cast %180 : vector<1x32x96xbf16> to vector<32x96xbf16>
    %cst_132 = arith.constant dense<0.000000e+00> : vector<8x96xf32>
    %182 = tpu.matmul %179, %181, %cst_132 {dimension_numbers = #tpu.dot_dimension_numbers<[1], [0], [0], [1], [0, 0, 1, 1], [], []>} : vector<8x32xbf16>, vector<32x96xbf16>, vector<8x96xf32> -> vector<8x96xf32>
    %c2_133 = arith.constant 2 : index
    %c0_134 = arith.constant 0 : index
    %c0_135 = arith.constant 0 : index
    %183 = vector.load %arg10[%c2_133, %c0_134, %c0_135] : memref<3x1x96xf32, #tpu.memory_space<vmem>>, vector<1x1x96xf32>
    %184 = vector.shape_cast %183 : vector<1x1x96xf32> to vector<1x96xf32>
    %185 = vector.broadcast %184 : vector<1x96xf32> to vector<8x96xf32>
    %186 = arith.addf %182, %185 : vector<8x96xf32>
    %187 = vector.extract_strided_slice %178 {offsets = [0, 0], sizes = [8, 64], strides = [1, 1]} : vector<8x96xf32> to vector<8x64xf32>
    %188 = vector.extract_strided_slice %186 {offsets = [0, 0], sizes = [8, 64], strides = [1, 1]} : vector<8x96xf32> to vector<8x64xf32>
    %189 = arith.addf %187, %188 : vector<8x64xf32>
    %190 = arith.negf %189 : vector<8x64xf32>
    %191 = math.exp %190 : vector<8x64xf32>
    %cst_136 = arith.constant 1.000000e+00 : f32
    %192 = vector.broadcast %cst_136 : f32 to vector<8x64xf32>
    %193 = arith.addf %192, %191 : vector<8x64xf32>
    %194 = arith.divf %192, %193 : vector<8x64xf32>
    %195 = vector.extract_strided_slice %194 {offsets = [0, 0], sizes = [8, 32], strides = [1, 1]} : vector<8x64xf32> to vector<8x32xf32>
    %196 = vector.extract_strided_slice %194 {offsets = [0, 32], sizes = [8, 32], strides = [1, 1]} : vector<8x64xf32> to vector<8x32xf32>
    %197 = vector.extract_strided_slice %178 {offsets = [0, 64], sizes = [8, 32], strides = [1, 1]} : vector<8x96xf32> to vector<8x32xf32>
    %198 = vector.extract_strided_slice %186 {offsets = [0, 64], sizes = [8, 32], strides = [1, 1]} : vector<8x96xf32> to vector<8x32xf32>
    %199 = arith.mulf %195, %198 : vector<8x32xf32>
    %200 = arith.addf %197, %199 : vector<8x32xf32>
    %201 = math.tanh %200 : vector<8x32xf32>
    %cst_137 = arith.constant 1.000000e+00 : f32
    %202 = vector.broadcast %cst_137 : f32 to vector<8x32xf32>
    %203 = arith.subf %202, %196 : vector<8x32xf32>
    %204 = arith.mulf %203, %201 : vector<8x32xf32>
    %205 = arith.mulf %196, %151 : vector<8x32xf32>
    %206 = arith.addf %204, %205 : vector<8x32xf32>
    %207 = arith.truncf %206 : vector<8x32xf32> to vector<8x32xbf16>
    %c2_138 = arith.constant 2 : index
    %c0_139 = arith.constant 0 : index
    %c0_140 = arith.constant 0 : index
    %208 = vector.load %arg11[%c2_138, %c0_139, %c0_140] : memref<3x32x8xbf16, #tpu.memory_space<vmem>>, vector<1x32x8xbf16>
    %209 = vector.shape_cast %208 : vector<1x32x8xbf16> to vector<32x8xbf16>
    %cst_141 = arith.constant dense<0.000000e+00> : vector<8x8xf32>
    %210 = tpu.matmul %207, %209, %cst_141 {dimension_numbers = #tpu.dot_dimension_numbers<[1], [0], [0], [1], [0, 0, 1, 1], [], []>} : vector<8x32xbf16>, vector<32x8xbf16>, vector<8x8xf32> -> vector<8x8xf32>
    %c2_142 = arith.constant 2 : index
    %c0_143 = arith.constant 0 : index
    %c0_144 = arith.constant 0 : index
    %211 = vector.load %arg12[%c2_142, %c0_143, %c0_144] : memref<3x1x8xf32, #tpu.memory_space<vmem>>, vector<1x1x8xf32>
    %212 = vector.shape_cast %211 : vector<1x1x8xf32> to vector<1x8xf32>
    %213 = vector.broadcast %212 : vector<1x8xf32> to vector<8x8xf32>
    %214 = arith.addf %210, %213 : vector<8x8xf32>
    %215 = vector.shape_cast %214 : vector<8x8xf32> to vector<1x8x8xf32>
    %c0_145 = arith.constant 0 : index
    %c0_146 = arith.constant 0 : index
    %c2_147 = arith.constant 2 : index
    %c0_148 = arith.constant 0 : index
    %216 = vector.load %arg13[%c0_145, %c0_146, %c2_147, %c0_148] : memref<1x8x3x8xf32, #tpu.memory_space<vmem>>, vector<1x8x1x8xf32>
    %217 = vector.shape_cast %216 : vector<1x8x1x8xf32> to vector<1x8x8xf32>
    %218 = vector.shape_cast %215 : vector<1x8x8xf32> to vector<1x8x1x8xf32>
    tpu.vector_store %arg13[%c0_145, %c0_146, %c2_147, %c0_148], %218 {strides = array<i32>} : memref<1x8x3x8xf32, #tpu.memory_space<vmem>>, vector<1x8x1x8xf32>,
    %219 = vector.shape_cast %206 : vector<8x32xf32> to vector<1x8x32xf32>
    %c0_149 = arith.constant 0 : index
    %c0_150 = arith.constant 0 : index
    %c0_151 = arith.constant 0 : index
    %220 = vector.load %arg14[%c0_149, %c0_150, %c0_151] : memref<1x8x32xf32, #tpu.memory_space<vmem>>, vector<1x8x32xf32>
    tpu.vector_store %arg14[%c0_149, %c0_150, %c0_151], %219 {strides = array<i32>} : memref<1x8x32xf32, #tpu.memory_space<vmem>>, vector<1x8x32xf32>,
    return
  }
  func.func @transform_0(%arg0: i32) -> (i32, i32, i32, i32) {
    %c0_i32 = arith.constant 0 : i32
    %c0_i32_0 = arith.constant 0 : i32
    %c0_i32_1 = arith.constant 0 : i32
    %c0_i32_2 = arith.constant 0 : i32
    return %arg0, %c0_i32, %c0_i32_0, %c0_i32_1 : i32, i32, i32, i32
  }
  func.func @transform_1(%arg0: i32) -> (i32, i32, i32, i32) {
    %c0_i32 = arith.constant 0 : i32
    %c0_i32_0 = arith.constant 0 : i32
    %c0_i32_1 = arith.constant 0 : i32
    %c0_i32_2 = arith.constant 0 : i32
    return %arg0, %c0_i32, %c0_i32_0, %c0_i32_1 : i32, i32, i32, i32
  }
  func.func @transform_2(%arg0: i32) -> (i32, i32, i32) {
    %c0_i32 = arith.constant 0 : i32
    %c0_i32_0 = arith.constant 0 : i32
    %c0_i32_1 = arith.constant 0 : i32
    %c0_i32_2 = arith.constant 0 : i32
    return %c0_i32, %c0_i32_0, %c0_i32_1 : i32, i32, i32
  }
  func.func @transform_3(%arg0: i32) -> (i32, i32, i32) {
    %c0_i32 = arith.constant 0 : i32
    %c0_i32_0 = arith.constant 0 : i32
    %c0_i32_1 = arith.constant 0 : i32
    %c0_i32_2 = arith.constant 0 : i32
    return %c0_i32, %c0_i32_0, %c0_i32_1 : i32, i32, i32
  }
  func.func @transform_4(%arg0: i32) -> (i32, i32, i32) {
    %c0_i32 = arith.constant 0 : i32
    %c0_i32_0 = arith.constant 0 : i32
    %c0_i32_1 = arith.constant 0 : i32
    %c0_i32_2 = arith.constant 0 : i32
    return %c0_i32, %c0_i32_0, %c0_i32_1 : i32, i32, i32
  }
  func.func @transform_5(%arg0: i32) -> (i32, i32, i32) {
    %c0_i32 = arith.constant 0 : i32
    %c0_i32_0 = arith.constant 0 : i32
    %c0_i32_1 = arith.constant 0 : i32
    %c0_i32_2 = arith.constant 0 : i32
    return %c0_i32, %c0_i32_0, %c0_i32_1 : i32, i32, i32
  }
  func.func @transform_6(%arg0: i32) -> (i32, i32, i32) {
    %c0_i32 = arith.constant 0 : i32
    %c0_i32_0 = arith.constant 0 : i32
    %c0_i32_1 = arith.constant 0 : i32
    %c0_i32_2 = arith.constant 0 : i32
    return %c0_i32, %c0_i32_0, %c0_i32_1 : i32, i32, i32
  }
  func.func @transform_7(%arg0: i32) -> (i32, i32, i32) {
    %c0_i32 = arith.constant 0 : i32
    %c0_i32_0 = arith.constant 0 : i32
    %c0_i32_1 = arith.constant 0 : i32
    %c0_i32_2 = arith.constant 0 : i32
    return %c0_i32, %c0_i32_0, %c0_i32_1 : i32, i32, i32
  }
  func.func @transform_8(%arg0: i32) -> (i32, i32, i32) {
    %c0_i32 = arith.constant 0 : i32
    %c0_i32_0 = arith.constant 0 : i32
    %c0_i32_1 = arith.constant 0 : i32
    %c0_i32_2 = arith.constant 0 : i32
    return %c0_i32, %c0_i32_0, %c0_i32_1 : i32, i32, i32
  }
  func.func @transform_9(%arg0: i32) -> (i32, i32, i32) {
    %c0_i32 = arith.constant 0 : i32
    %c0_i32_0 = arith.constant 0 : i32
    %c0_i32_1 = arith.constant 0 : i32
    %c0_i32_2 = arith.constant 0 : i32
    return %c0_i32, %c0_i32_0, %c0_i32_1 : i32, i32, i32
  }
  func.func @transform_10(%arg0: i32) -> (i32, i32, i32) {
    %c0_i32 = arith.constant 0 : i32
    %c0_i32_0 = arith.constant 0 : i32
    %c0_i32_1 = arith.constant 0 : i32
    %c0_i32_2 = arith.constant 0 : i32
    return %c0_i32, %c0_i32_0, %c0_i32_1 : i32, i32, i32
  }
  func.func @transform_11(%arg0: i32) -> (i32, i32, i32) {
    %c0_i32 = arith.constant 0 : i32
    %c0_i32_0 = arith.constant 0 : i32
    %c0_i32_1 = arith.constant 0 : i32
    %c0_i32_2 = arith.constant 0 : i32
    return %c0_i32, %c0_i32_0, %c0_i32_1 : i32, i32, i32
  }
  func.func @transform_12(%arg0: i32) -> (i32, i32, i32, i32) {
    %c0_i32 = arith.constant 0 : i32
    %c0_i32_0 = arith.constant 0 : i32
    %c0_i32_1 = arith.constant 0 : i32
    %c0_i32_2 = arith.constant 0 : i32
    return %arg0, %c0_i32, %c0_i32_0, %c0_i32_1 : i32, i32, i32, i32
  }
  func.func @transform_13(%arg0: i32) -> (i32, i32, i32) {
    %c0_i32 = arith.constant 0 : i32
    %c0_i32_0 = arith.constant 0 : i32
    %c0_i32_1 = arith.constant 0 : i32
    return %arg0, %c0_i32, %c0_i32_0 : i32, i32, i32
  }
}

</mosaic_0001>

<llo_original>
// kernel: qnet_forward.1
$region0: #{qnet_forward.1}
  #allocation0 [shape = 'u32[]', space=smem, size = 0x4, offset = 0x4, fixed_abs, tag = 'smem constant byte address 0x4 - core index']
  #allocation1 [shape = 'u32[144,128]{1,0:T(1,128)}', space=vmem, size = 0x12000, scoped, tag = 'internal scratch']
  %s0 = inlined_call_operand.vmem [shape: bf16[2,3,8,16], index: 0, kind: input, shape index: {}]
  %s1 = inlined_call_operand.vmem [shape: f32[2,3,8,32], index: 1, kind: input, shape index: {}]
  %s2 = inlined_call_operand.vmem [shape: bf16[3,16,128], index: 2, kind: input, shape index: {}]
  %s3 = inlined_call_operand.vmem [shape: f32[3,1,128], index: 3, kind: input, shape index: {}]
  %s4 = inlined_call_operand.vmem [shape: bf16[3,128,32], index: 4, kind: input, shape index: {}]
  %s5 = inlined_call_operand.vmem [shape: f32[3,1,32], index: 5, kind: input, shape index: {}]
  %s6 = inlined_call_operand.vmem [shape: bf16[3,32,96], index: 6, kind: input, shape index: {}]
  %s7 = inlined_call_operand.vmem [shape: bf16[3,32,96], index: 7, kind: input, shape index: {}]
  %s8 = inlined_call_operand.vmem [shape: f32[3,1,96], index: 8, kind: input, shape index: {}]
  %s9 = inlined_call_operand.vmem [shape: f32[3,1,96], index: 9, kind: input, shape index: {}]
  %s10 = inlined_call_operand.vmem [shape: bf16[3,32,8], index: 10, kind: input, shape index: {}]
  %s11 = inlined_call_operand.vmem [shape: f32[3,1,8], index: 11, kind: input, shape index: {}]
  %s12 = inlined_call_operand.vmem [shape: f32[2,8,3,8], index: 12, kind: output, shape index: {0}]
  %s13 = inlined_call_operand.vmem [shape: f32[2,8,32], index: 13, kind: output, shape index: {1}]
  %14 = xla_tuple %s12, %s13
  %s15 = sld [smem:[#allocation0]]
  $region89: #{qnet_forward.1} parent=0
    _
  %s17 = ssub.s32 1, %s15
  %s18 = scalar_select 0, %s17, %s15
  loop: start=0, step=1, limit=4
  $region2: #{qnet_forward.1} parent=0 // loop_pre_header
    _
  $region3: #{qnet_forward.1} parent=0 // loop_header
    %s20 = sphi 0, %s24
    %p21 = scmp.ge.s32.totalorder %s20, 4
    %s30 = sphi 0, %s32
    %s33 = sphi 0, %s30
    %s34 = sphi 0, %s33
    %s50 = sphi 0, %s34
    %s56 = sphi 0, %s58
    %s59 = sphi 0, %s56
    %s60 = sphi 0, %s59
    %s76 = sphi 0, %s60
    %s80 = sphi 0, %s80
    %s82 = sphi 0, %s80
    %s83 = sphi 0, %s82
    %s97 = sphi 0, %s83
    %s101 = sphi 0, %s101
    %s103 = sphi 0, %s101
    %s104 = sphi 0, %s103
    %s118 = sphi 0, %s104
    %s122 = sphi 0, %s122
    %s124 = sphi 0, %s122
    %s125 = sphi 0, %s124
    %s139 = sphi 0, %s125
    %s143 = sphi 0, %s143
    %s145 = sphi 0, %s143
    %s146 = sphi 0, %s145
    %s160 = sphi 0, %s146
    %s164 = sphi 0, %s164
    %s166 = sphi 0, %s164
    %s167 = sphi 0, %s166
    %s181 = sphi 0, %s167
    %s185 = sphi 0, %s185
    %s187 = sphi 0, %s185
    %s188 = sphi 0, %s187
    %s202 = sphi 0, %s188
    %s206 = sphi 0, %s206
    %s208 = sphi 0, %s206
    %s209 = sphi 0, %s208
    %s223 = sphi 0, %s209
    %s227 = sphi 0, %s227
    %s229 = sphi 0, %s227
    %s230 = sphi 0, %s229
    %s244 = sphi 0, %s230
    %s248 = sphi 0, %s248
    %s250 = sphi 0, %s248
    %s251 = sphi 0, %s250
    %s265 = sphi 0, %s251
    %s269 = sphi 0, %s269
    %s271 = sphi 0, %s269
    %s272 = sphi 0, %s271
    %s286 = sphi 0, %s272
    %s292 = sphi 0, %s294
    %s295 = sphi 0, %s292
    %s296 = sphi 0, %s295
    %s312 = sphi 0, %s296
    %s318 = sphi 0, %s320
    %s321 = sphi 0, %s318
    %s322 = sphi 0, %s321
    %s338 = sphi 0, %s322
  $region4: #{qnet_forward.1} parent=0 // loop_header_branch
    %23 = sbr.rel (%p21) target = $region8
  $region5: #{qnet_forward.1} parent=0 // loop_body
    %s25 = ssub.s32 %s20, 1
    %s26 = ssub.s32 %s20, 2
    %s27 = sadd.s32 %s20, 1
    %s28 = ssub.s32 %s20, %s27
    %p29 = scmp.eq.s32.totalorder %s28, 0
    %s31 = sadd.s32 %s30, 1
    %s32 = scalar_select %p29, %s30, %s31
    %p35 = pneg %p29
    %p36 = scmp.eq.s32.totalorder %s20, 1
    %p37 = por %p35, %p36
    %p38 = scmp.ne.s32.totalorder %s30, %s33
    %p39 = scmp.eq.s32.totalorder %s20, 0
    %p40 = por %p38, %p39
    %p41 = scmp.ne.s32.totalorder %s30, %s33
    %p42 = scmp.eq.s32.totalorder %s25, 1
    %p43 = por %p41, %p42
    %p44 = scmp.ne.s32.totalorder %s33, %s34
    %p45 = scmp.eq.s32.totalorder %s25, 0
    %p46 = por %p44, %p45
    %p47 = scmp.ne.s32.totalorder %s33, %s34
    %p48 = scmp.eq.s32.totalorder %s26, 1
    %p49 = por %p47, %p48
    %p51 = scmp.ne.s32.totalorder %s34, %s50
    %p52 = scmp.eq.s32.totalorder %s26, 0
    %p53 = por %p51, %p52
    %s54 = ssub.s32 %s20, %s27
    %p55 = scmp.eq.s32.totalorder %s54, 0
    %s57 = sadd.s32 %s56, 1
    %s58 = scalar_select %p55, %s56, %s57
    %p61 = pneg %p55
    %p62 = scmp.eq.s32.totalorder %s20, 1
    %p63 = por %p61, %p62
    %p64 = scmp.ne.s32.totalorder %s56, %s59
    %p65 = scmp.eq.s32.totalorder %s20, 0
    %p66 = por %p64, %p65
    %p67 = scmp.ne.s32.totalorder %s56, %s59
    %p68 = scmp.eq.s32.totalorder %s25, 1
    %p69 = por %p67, %p68
    %p70 = scmp.ne.s32.totalorder %s59, %s60
    %p71 = scmp.eq.s32.totalorder %s25, 0
    %p72 = por %p70, %p71
    %p73 = scmp.ne.s32.totalorder %s59, %s60
    %p74 = scmp.eq.s32.totalorder %s26, 1
    %p75 = por %p73, %p74
    %p77 = scmp.ne.s32.totalorder %s60, %s76
    %p78 = scmp.eq.s32.totalorder %s26, 0
    %p79 = por %p77, %p78
    %s81 = sadd.s32 %s80, 1
    %p84 = scmp.eq.s32.totalorder %s20, 1
    %p85 = scmp.ne.s32.totalorder %s80, %s82
    %p86 = scmp.eq.s32.totalorder %s20, 0
    %p87 = por %p85, %p86
    %p88 = scmp.ne.s32.totalorder %s80, %s82
    %p89 = scmp.eq.s32.totalorder %s25, 1
    %p90 = por %p88, %p89
    %p91 = scmp.ne.s32.totalorder %s82, %s83
    %p92 = scmp.eq.s32.totalorder %s25, 0
    %p93 = por %p91, %p92
    %p94 = scmp.ne.s32.totalorder %s82, %s83
    %p95 = scmp.eq.s32.totalorder %s26, 1
    %p96 = por %p94, %p95
    %p98 = scmp.ne.s32.totalorder %s83, %s97
    %p99 = scmp.eq.s32.totalorder %s26, 0
    %p100 = por %p98, %p99
    %s102 = sadd.s32 %s101, 1
    %p105 = scmp.eq.s32.totalorder %s20, 1
    %p106 = scmp.ne.s32.totalorder %s101, %s103
    %p107 = scmp.eq.s32.totalorder %s20, 0
    %p108 = por %p106, %p107
    %p109 = scmp.ne.s32.totalorder %s101, %s103
    %p110 = scmp.eq.s32.totalorder %s25, 1
    %p111 = por %p109, %p110
    %p112 = scmp.ne.s32.totalorder %s103, %s104
    %p113 = scmp.eq.s32.totalorder %s25, 0
    %p114 = por %p112, %p113
    %p115 = scmp.ne.s32.totalorder %s103, %s104
    %p116 = scmp.eq.s32.totalorder %s26, 1
    %p117 = por %p115, %p116
    %p119 = scmp.ne.s32.totalorder %s104, %s118
    %p120 = scmp.eq.s32.totalorder %s26, 0
    %p121 = por %p119, %p120
    %s123 = sadd.s32 %s122, 1
    %p126 = scmp.eq.s32.totalorder %s20, 1
    %p127 = scmp.ne.s32.totalorder %s122, %s124
    %p128 = scmp.eq.s32.totalorder %s20, 0
    %p129 = por %p127, %p128
    %p130 = scmp.ne.s32.totalorder %s122, %s124
    %p131 = scmp.eq.s32.totalorder %s25, 1
    %p132 = por %p130, %p131
    %p133 = scmp.ne.s32.totalorder %s124, %s125
    %p134 = scmp.eq.s32.totalorder %s25, 0
    %p135 = por %p133, %p134
    %p136 = scmp.ne.s32.totalorder %s124, %s125
    %p137 = scmp.eq.s32.totalorder %s26, 1
    %p138 = por %p136, %p137
    %p140 = scmp.ne.s32.totalorder %s125, %s139
    %p141 = scmp.eq.s32.totalorder %s26, 0
    %p142 = por %p140, %p141
    %s144 = sadd.s32 %s143, 1
    %p147 = scmp.eq.s32.totalorder %s20, 1
    %p148 = scmp.ne.s32.totalorder %s143, %s145
    %p149 = scmp.eq.s32.totalorder %s20, 0
    %p150 = por %p148, %p149
    %p151 = scmp.ne.s32.totalorder %s143, %s145
    %p152 = scmp.eq.s32.totalorder %s25, 1
    %p153 = por %p151, %p152
    %p154 = scmp.ne.s32.totalorder %s145, %s146
    %p155 = scmp.eq.s32.totalorder %s25, 0
    %p156 = por %p154, %p155
    %p157 = scmp.ne.s32.totalorder %s145, %s146
    %p158 = scmp.eq.s32.totalorder %s26, 1
    %p159 = por %p157, %p158
    %p161 = scmp.ne.s32.totalorder %s146, %s160
    %p162 = scmp.eq.s32.totalorder %s26, 0
    %p163 = por %p161, %p162
    %s165 = sadd.s32 %s164, 1
    %p168 = scmp.eq.s32.totalorder %s20, 1
    %p169 = scmp.ne.s32.totalorder %s164, %s166
    %p170 = scmp.eq.s32.totalorder %s20, 0
    %p171 = por %p169, %p170
    %p172 = scmp.ne.s32.totalorder %s164, %s166
    %p173 = scmp.eq.s32.totalorder %s25, 1
    %p174 = por %p172, %p173
    %p175 = scmp.ne.s32.totalorder %s166, %s167
    %p176 = scmp.eq.s32.totalorder %s25, 0
    %p177 = por %p175, %p176
    %p178 = scmp.ne.s32.totalorder %s166, %s167
    %p179 = scmp.eq.s32.totalorder %s26, 1
    %p180 = por %p178, %p179
    %p182 = scmp.ne.s32.totalorder %s167, %s181
    %p183 = scmp.eq.s32.totalorder %s26, 0
    %p184 = por %p182, %p183
    %s186 = sadd.s32 %s185, 1
    %p189 = scmp.eq.s32.totalorder %s20, 1
    %p190 = scmp.ne.s32.totalorder %s185, %s187
    %p191 = scmp.eq.s32.totalorder %s20, 0
    %p192 = por %p190, %p191
    %p193 = scmp.ne.s32.totalorder %s185, %s187
    %p194 = scmp.eq.s32.totalorder %s25, 1
    %p195 = por %p193, %p194
    %p196 = scmp.ne.s32.totalorder %s187, %s188
    %p197 = scmp.eq.s32.totalorder %s25, 0
    %p198 = por %p196, %p197
    %p199 = scmp.ne.s32.totalorder %s187, %s188
    %p200 = scmp.eq.s32.totalorder %s26, 1
    %p201 = por %p199, %p200
    %p203 = scmp.ne.s32.totalorder %s188, %s202
    %p204 = scmp.eq.s32.totalorder %s26, 0
    %p205 = por %p203, %p204
    %s207 = sadd.s32 %s206, 1
    %p210 = scmp.eq.s32.totalorder %s20, 1
    %p211 = scmp.ne.s32.totalorder %s206, %s208
    %p212 = scmp.eq.s32.totalorder %s20, 0
    %p213 = por %p211, %p212
    %p214 = scmp.ne.s32.totalorder %s206, %s208
    %p215 = scmp.eq.s32.totalorder %s25, 1
    %p216 = por %p214, %p215
    %p217 = scmp.ne.s32.totalorder %s208, %s209
    %p218 = scmp.eq.s32.totalorder %s25, 0
    %p219 = por %p217, %p218
    %p220 = scmp.ne.s32.totalorder %s208, %s209
    %p221 = scmp.eq.s32.totalorder %s26, 1
    %p222 = por %p220, %p221
    %p224 = scmp.ne.s32.totalorder %s209, %s223
    %p225 = scmp.eq.s32.totalorder %s26, 0
    %p226 = por %p224, %p225
    %s228 = sadd.s32 %s227, 1
    %p231 = scmp.eq.s32.totalorder %s20, 1
    %p232 = scmp.ne.s32.totalorder %s227, %s229
    %p233 = scmp.eq.s32.totalorder %s20, 0
    %p234 = por %p232, %p233
    %p235 = scmp.ne.s32.totalorder %s227, %s229
    %p236 = scmp.eq.s32.totalorder %s25, 1
    %p237 = por %p235, %p236
    %p238 = scmp.ne.s32.totalorder %s229, %s230
    %p239 = scmp.eq.s32.totalorder %s25, 0
    %p240 = por %p238, %p239
    %p241 = scmp.ne.s32.totalorder %s229, %s230
    %p242 = scmp.eq.s32.totalorder %s26, 1
    %p243 = por %p241, %p242
    %p245 = scmp.ne.s32.totalorder %s230, %s244
    %p246 = scmp.eq.s32.totalorder %s26, 0
    %p247 = por %p245, %p246
    %s249 = sadd.s32 %s248, 1
    %p252 = scmp.eq.s32.totalorder %s20, 1
    %p253 = scmp.ne.s32.totalorder %s248, %s250
    %p254 = scmp.eq.s32.totalorder %s20, 0
    %p255 = por %p253, %p254
    %p256 = scmp.ne.s32.totalorder %s248, %s250
    %p257 = scmp.eq.s32.totalorder %s25, 1
    %p258 = por %p256, %p257
    %p259 = scmp.ne.s32.totalorder %s250, %s251
    %p260 = scmp.eq.s32.totalorder %s25, 0
    %p261 = por %p259, %p260
    %p262 = scmp.ne.s32.totalorder %s250, %s251
    %p263 = scmp.eq.s32.totalorder %s26, 1
    %p264 = por %p262, %p263
    %p266 = scmp.ne.s32.totalorder %s251, %s265
    %p267 = scmp.eq.s32.totalorder %s26, 0
    %p268 = por %p266, %p267
    %s270 = sadd.s32 %s269, 1
    %p273 = scmp.eq.s32.totalorder %s20, 1
    %p274 = scmp.ne.s32.totalorder %s269, %s271
    %p275 = scmp.eq.s32.totalorder %s20, 0
    %p276 = por %p274, %p275
    %p277 = scmp.ne.s32.totalorder %s269, %s271
    %p278 = scmp.eq.s32.totalorder %s25, 1
    %p279 = por %p277, %p278
    %p280 = scmp.ne.s32.totalorder %s271, %s272
    %p281 = scmp.eq.s32.totalorder %s25, 0
    %p282 = por %p280, %p281
    %p283 = scmp.ne.s32.totalorder %s271, %s272
    %p284 = scmp.eq.s32.totalorder %s26, 1
    %p285 = por %p283, %p284
    %p287 = scmp.ne.s32.totalorder %s272, %s286
    %p288 = scmp.eq.s32.totalorder %s26, 0
    %p289 = por %p287, %p288
    %s290 = ssub.s32 %s20, %s27
    %p291 = scmp.eq.s32.totalorder %s290, 0
    %s293 = sadd.s32 %s292, 1
    %s294 = scalar_select %p291, %s292, %s293
    %p297 = pneg %p291
    %p298 = scmp.eq.s32.totalorder %s20, 1
    %p299 = por %p297, %p298
    %p300 = scmp.ne.s32.totalorder %s292, %s295
    %p301 = scmp.eq.s32.totalorder %s20, 0
    %p302 = por %p300, %p301
    %p303 = scmp.ne.s32.totalorder %s292, %s295
    %p304 = scmp.eq.s32.totalorder %s25, 1
    %p305 = por %p303, %p304
    %p306 = scmp.ne.s32.totalorder %s295, %s296
    %p307 = scmp.eq.s32.totalorder %s25, 0
    %p308 = por %p306, %p307
    %p309 = scmp.ne.s32.totalorder %s295, %s296
    %p310 = scmp.eq.s32.totalorder %s26, 1
    %p311 = por %p309, %p310
    %p313 = scmp.ne.s32.totalorder %s296, %s312
    %p314 = scmp.eq.s32.totalorder %s26, 0
    %p315 = por %p313, %p314
    %s316 = ssub.s32 %s20, %s27
    %p317 = scmp.eq.s32.totalorder %s316, 0
    %s319 = sadd.s32 %s318, 1
    %s320 = scalar_select %p317, %s318, %s319
    %p323 = pneg %p317
    %p324 = scmp.eq.s32.totalorder %s20, 1
    %p325 = por %p323, %p324
    %p326 = scmp.ne.s32.totalorder %s318, %s321
    %p327 = scmp.eq.s32.totalorder %s20, 0
    %p328 = por %p326, %p327
    %p329 = scmp.ne.s32.totalorder %s318, %s321
    %p330 = scmp.eq.s32.totalorder %s25, 1
    %p331 = por %p329, %p330
    %p332 = scmp.ne.s32.totalorder %s321, %s322
    %p333 = scmp.eq.s32.totalorder %s25, 0
    %p334 = por %p332, %p333
    %p335 = scmp.ne.s32.totalorder %s321, %s322
    %p336 = scmp.eq.s32.totalorder %s26, 1
    %p337 = por %p335, %p336
    %p339 = scmp.ne.s32.totalorder %s322, %s338
    %p340 = scmp.eq.s32.totalorder %s26, 0
    %p341 = por %p339, %p340
    %p342 = scmp.le.s32.totalorder 1, %s20
    %p343 = scmp.lt.s32.totalorder %s20, 3
    %p344 = pnand %p342, %p343
    %p345 = pneg %p344
    // Predicated region
    $region9: #{qnet_forward.1} parent=5 // pred_check
      _
    $region10: #{qnet_forward.1} parent=5 // pred_check_branch
      %347 = sbr.rel (%p344) target = $region12
    $region11: #{qnet_forward.1} parent=5 // pred_region
      %s348 = ssub.s32 %s20, 1
      // Predicated region
      $region13: #{qnet_forward.1} parent=11 // pred_check
        %p349 = pneg %p93
      $region14: #{qnet_forward.1} parent=11 // pred_check_branch
        %351 = sbr.rel (%p349) target = $region16
      $region15: #{qnet_forward.1} parent=11 // pred_region
        _
      $region16: #{qnet_forward.1} parent=11 // pred_fallthru
        _
      // Predicated region
      $region17: #{qnet_forward.1} parent=11 // pred_check
        %p352 = pneg %p114
      $region18: #{qnet_forward.1} parent=11 // pred_check_branch
        %354 = sbr.rel (%p352) target = $region20
      $region19: #{qnet_forward.1} parent=11 // pred_region
        _
      $region20: #{qnet_forward.1} parent=11 // pred_fallthru
        _
      // Predicated region
      $region21: #{qnet_forward.1} parent=11 // pred_check
        %p355 = pneg %p135
      $region22: #{qnet_forward.1} parent=11 // pred_check_branch
        %357 = sbr.rel (%p355) target = $region24
      $region23: #{qnet_forward.1} parent=11 // pred_region
        _
      $region24: #{qnet_forward.1} parent=11 // pred_fallthru
        _
      // Predicated region
      $region25: #{qnet_forward.1} parent=11 // pred_check
        %p358 = pneg %p156
      $region26: #{qnet_forward.1} parent=11 // pred_check_branch
        %360 = sbr.rel (%p358) target = $region28
      $region27: #{qnet_forward.1} parent=11 // pred_region
        _
      $region28: #{qnet_forward.1} parent=11 // pred_fallthru
        _
      // Predicated region
      $region29: #{qnet_forward.1} parent=11 // pred_check
        %p361 = pneg %p177
      $region30: #{qnet_forward.1} parent=11 // pred_check_branch
        %363 = sbr.rel (%p361) target = $region32
      $region31: #{qnet_forward.1} parent=11 // pred_region
        _
      $region32: #{qnet_forward.1} parent=11 // pred_fallthru
        _
      // Predicated region
      $region33: #{qnet_forward.1} parent=11 // pred_check
        %p364 = pneg %p198
      $region34: #{qnet_forward.1} parent=11 // pred_check_branch
        %366 = sbr.rel (%p364) target = $region36
      $region35: #{qnet_forward.1} parent=11 // pred_region
        _
      $region36: #{qnet_forward.1} parent=11 // pred_fallthru
        _
      // Predicated region
      $region37: #{qnet_forward.1} parent=11 // pred_check
        %p367 = pneg %p219
      $region38: #{qnet_forward.1} parent=11 // pred_check_branch
        %369 = sbr.rel (%p367) target = $region40
      $region39: #{qnet_forward.1} parent=11 // pred_region
        _
      $region40: #{qnet_forward.1} parent=11 // pred_fallthru
        _
      // Predicated region
      $region41: #{qnet_forward.1} parent=11 // pred_check
        %p370 = pneg %p240
      $region42: #{qnet_forward.1} parent=11 // pred_check_branch
        %372 = sbr.rel (%p370) target = $region44
      $region43: #{qnet_forward.1} parent=11 // pred_region
        _
      $region44: #{qnet_forward.1} parent=11 // pred_fallthru
        _
      // Predicated region
      $region45: #{qnet_forward.1} parent=11 // pred_check
        %p373 = pneg %p261
      $region46: #{qnet_forward.1} parent=11 // pred_check_branch
        %375 = sbr.rel (%p373) target = $region48
      $region47: #{qnet_forward.1} parent=11 // pred_region
        _
      $region48: #{qnet_forward.1} parent=11 // pred_fallthru
        _
      // Predicated region
      $region49: #{qnet_forward.1} parent=11 // pred_check
        %p376 = pneg %p282
      $region50: #{qnet_forward.1} parent=11 // pred_check_branch
        %378 = sbr.rel (%p376) target = $region52
      $region51: #{qnet_forward.1} parent=11 // pred_region
        _
      $region52: #{qnet_forward.1} parent=11 // pred_fallthru
        _
    $region12: #{qnet_forward.1} parent=5 // pred_fallthru
      _
    %p379 = scmp.lt.s32.totalorder %s20, 2
    // Predicated region
    $region53: #{qnet_forward.1} parent=5 // pred_check
      %p380 = pneg %p379
    $region54: #{qnet_forward.1} parent=5 // pred_check_branch
      %382 = sbr.rel (%p380) target = $region56
    $region55: #{qnet_forward.1} parent=5 // pred_region
      // Predicated region
      $region57: #{qnet_forward.1} parent=55 // pred_check
        %p383 = pneg %p40
      $region58: #{qnet_forward.1} parent=55 // pred_check_branch
        %385 = sbr.rel (%p383) target = $region60
      $region59: #{qnet_forward.1} parent=55 // pred_region
        %p386 = scmp.lt.s32.totalorder %s20, 1
        %s387 = scalar_select %p386, %s20, 1
        %s388 = smul.addr %s387, 3
        %s389 = smul.addr %s388, 4
        %s390 = scalar_lea.vmem %s0, %s389
      $region60: #{qnet_forward.1} parent=55 // pred_fallthru
        _
      // Predicated region
      $region61: #{qnet_forward.1} parent=55 // pred_check
        %p391 = pneg %p66
      $region62: #{qnet_forward.1} parent=55 // pred_check_branch
        %393 = sbr.rel (%p391) target = $region64
      $region63: #{qnet_forward.1} parent=55 // pred_region
        %p394 = scmp.lt.s32.totalorder %s20, 1
        %s395 = scalar_select %p394, %s20, 1
        %s396 = smul.addr %s395, 3
        %s397 = smul.addr %s396, 8
        %s398 = scalar_lea.vmem %s1, %s397
      $region64: #{qnet_forward.1} parent=55 // pred_fallthru
        _
    $region56: #{qnet_forward.1} parent=5 // pred_fallthru
      _
    %p399 = scmp.le.s32.totalorder 1, %s20
    %p400 = scmp.lt.s32.totalorder %s20, 3
    %p401 = pnand %p399, %p400
    %p402 = pneg %p401
    // Predicated region
    $region65: #{qnet_forward.1} parent=5 // pred_check
      _
    $region66: #{qnet_forward.1} parent=5 // pred_check_branch
      %404 = sbr.rel (%p401) target = $region68
    $region67: #{qnet_forward.1} parent=5 // pred_region
      %s405 = ssub.s32 %s20, 1
      %p406 = scmp.lt.s32.totalorder %s25, 1
      %s407 = scalar_select %p406, %s25, 1
      %s408 = smul.addr %s407, 3
      %s409 = smul.addr %s408, 4
      %s410 = scalar_lea.vmem %s0, %s409
      %p411 = pneg %p46
      %p412 = pneg %p43
      %p413 = scmp.lt.s32.totalorder %s25, 1
      %s414 = scalar_select %p413, %s25, 1
      %s415 = smul.addr %s414, 3
      %s416 = smul.addr %s415, 8
      %s417 = scalar_lea.vmem %s1, %s416
      %p418 = pneg %p72
      %p419 = pneg %p69
      %p420 = pneg %p93
      %p421 = pneg %p90
      %p422 = pneg %p114
      %p423 = pneg %p111
      %p424 = pneg %p135
      %p425 = pneg %p132
      %p426 = pneg %p156
      %p427 = pneg %p153
      %p428 = pneg %p177
      %p429 = pneg %p174
      %p430 = pneg %p198
      %p431 = pneg %p195
      %p432 = pneg %p219
      %p433 = pneg %p216
      %p434 = pneg %p240
      %p435 = pneg %p237
      %p436 = pneg %p261
      %p437 = pneg %p258
      %p438 = pneg %p282
      %p439 = pneg %p279
      %p440 = pneg %p308
      %p441 = pneg %p305
      %p442 = scmp.lt.s32.totalorder %s25, 1
      %s443 = scalar_select %p442, %s25, 1
      %s444 = smul.addr %s443, 8
      %s445 = smul.addr %s444, 4
      %s446 = scalar_lea.vmem %s12, %s445
      %p447 = pneg %p334
      %p448 = pneg %p331
      %p449 = scmp.lt.s32.totalorder %s25, 1
      %s450 = scalar_select %p449, %s25, 1
      %s451 = smul.addr %s450, 8
      %s452 = scalar_lea.vmem %s13, %s451
      %p453 = scmp.lt.s32.totalorder %s25, 1
      %s454 = scalar_select %p453, %s25, 1
      %s455 = smul.addr %s454, 3
      %s456 = smul.addr %s455, 4
      %s457 = scalar_lea.vmem %s0, %s456
      %p458 = scmp.lt.s32.totalorder %s25, 1
      %s459 = scalar_select %p458, %s25, 1
      %s460 = smul.addr %s459, 3
      %s461 = smul.addr %s460, 8
      %s462 = scalar_lea.vmem %s1, %s461
      %p463 = scmp.lt.s32.totalorder %s25, 1
      %s464 = scalar_select %p463, %s25, 1
      %s465 = smul.addr %s464, 8
      %s466 = smul.addr %s465, 4
      %s467 = scalar_lea.vmem %s12, %s466
      %p468 = scmp.lt.s32.totalorder %s25, 1
      %s469 = scalar_select %p468, %s25, 1
      %s470 = smul.addr %s469, 8
      %s471 = scalar_lea.vmem %s13, %s470
      %v473 = vld [vmem:[%s457] sm:$0xf]
      %v474 = vld [vmem:[%s462] sm:$0xff]
      %v475 = vld [vmem:[%s2] sm:$0xf]
      %v476 = vld [vmem:[%s2 + $0x4] sm:$0xf]
      %v477 = vld [vmem:[%s3] sm:$0x1]
      %v479 = vlaneseq
      %v480 = vshrl.u32 %v479, 7
      %v481 = vsub.s32 0, %v480
      %v482 = vrot.slane %v477, %v481
      %v486 = vunpack.c.l.b16 %v475
      %v487 = vunpack.c.l.b16 %v476
      %v488 = vpack.c.b16 %v487, %v486
      %vm490 = vcmask 130048
      %v492 = vsel %vm490, %v473, 0
      %494 = vmatprep.subr.bf16.mxu0 0
      %495 = vmatpush1.bf16.msra.mxu0 0
      %496 = vmatprep.subr.bf16.mxu0 0
      %497 = vmatpush1.bf16.msra.mxu0 0
      %498 = vmatprep.subr.bf16.mxu0 0
      %499 = vmatpush1.bf16.msra.mxu0 0
      %500 = vmatprep.subr.bf16.mxu0 0
      %501 = vmatpush1.bf16.msra.mxu0 0
      %502 = vmatprep.subr.bf16.mxu0 0
      %503 = vmatpush1.bf16.msra.mxu0 0
      %504 = vmatprep.subr.bf16.mxu0 0
      %505 = vmatpush1.bf16.msra.mxu0 0
      %506 = vmatprep.subr.bf16.mxu0 0
      %507 = vmatpush1.bf16.msra.mxu0 0
      %508 = vmatprep.subr.bf16.mxu0 0
      %509 = vmatpush1.bf16.msra.mxu0 %v488
      %510 = vmatprep.subr.bf16.mxu0 0
      %511 = vmatpush2.bf16.msra.mxu0 0
      %512 = vmatprep.subr.bf16.mxu0 0
      %513 = vmatpush2.bf16.msra.mxu0 0
      %514 = vmatprep.subr.bf16.mxu0 0
      %515 = vmatpush2.bf16.msra.mxu0 0
      %516 = vmatprep.subr.bf16.mxu0 0
      %517 = vmatpush2.bf16.msra.mxu0 0
      %518 = vmatprep.subr.bf16.mxu0 0
      %519 = vmatpush2.bf16.msra.mxu0 0
      %520 = vmatprep.subr.bf16.mxu0 0
      %521 = vmatpush2.bf16.msra.mxu0 0
      %522 = vmatprep.subr.bf16.mxu0 0
      %523 = vmatpush2.bf16.msra.mxu0 0
      %524 = vmatprep.subr.bf16.mxu0 0
      %525 = vmatpush2.bf16.msra.mxu0 0
      %526 = vmatprep.mubr.bf16.mxu0 0
      %527 = vmatmul.mubr.bf16.gmra.mxu0 %v492
      %v528 = vpop.f32.mrf.mxu0
      %v529 = vadd.f32 %v482, %v528
      %v530 = vpop.f32.mrf.mxu0
      %v531 = vpop.f32.mrf.mxu0
      %v532 = vpop.f32.mrf.mxu0
      %533 = vdwg.mxu0
      %v534 = vmax.f32 %v529, 0.0
      %v535 = vpack.c.bf16 %v534, %v534
      %v536 = vld [vmem:[%s4] sm:$0xf]
      %v537 = vld [vmem:[%s4 + $0x4] sm:$0xf]
      %v538 = vld [vmem:[%s4 + $0x8] sm:$0xf]
      %v539 = vld [vmem:[%s4 + $0xc] sm:$0xf]
      %v540 = vld [vmem:[%s4 + $0x10] sm:$0xf]
      %v541 = vld [vmem:[%s4 + $0x14] sm:$0xf]
      %v542 = vld [vmem:[%s4 + $0x18] sm:$0xf]
      %v543 = vld [vmem:[%s4 + $0x1c] sm:$0xf]
      %v544 = vld [vmem:[%s4 + $0x20] sm:$0xf]
      %v545 = vld [vmem:[%s4 + $0x24] sm:$0xf]
      %v546 = vld [vmem:[%s4 + $0x28] sm:$0xf]
      %v547 = vld [vmem:[%s4 + $0x2c] sm:$0xf]
      %v548 = vld [vmem:[%s4 + $0x30] sm:$0xf]
      %v549 = vld [vmem:[%s4 + $0x34] sm:$0xf]
      %v550 = vld [vmem:[%s4 + $0x38] sm:$0xf]
      %v551 = vld [vmem:[%s4 + $0x3c] sm:$0xf]
      %v552 = vld [vmem:[%s5] sm:$0x1]
      %v554 = vlaneseq
      %v555 = vshrl.u32 %v554, 7
      %v556 = vsub.s32 0, %v555
      %v557 = vrot.slane %v552, %v556
      %v575 = vunpack.c.l.b16 %v536
      %v576 = vunpack.c.l.b16 %v537
      %v577 = vunpack.c.l.b16 %v538
      %v578 = vunpack.c.l.b16 %v539
      %v579 = vunpack.c.l.b16 %v540
      %v580 = vunpack.c.l.b16 %v541
      %v581 = vunpack.c.l.b16 %v542
      %v582 = vunpack.c.l.b16 %v543
      %v583 = vunpack.c.l.b16 %v544
      %v584 = vunpack.c.l.b16 %v545
      %v585 = vunpack.c.l.b16 %v546
      %v586 = vunpack.c.l.b16 %v547
      %v587 = vunpack.c.l.b16 %v548
      %v588 = vunpack.c.l.b16 %v549
      %v589 = vunpack.c.l.b16 %v550
      %v590 = vunpack.c.l.b16 %v551
      %v591 = vpack.c.b16 %v576, %v575
      %v592 = vpack.c.b16 %v578, %v577
      %v593 = vpack.c.b16 %v580, %v579
      %v594 = vpack.c.b16 %v582, %v581
      %v595 = vpack.c.b16 %v584, %v583
      %v596 = vpack.c.b16 %v586, %v585
      %v597 = vpack.c.b16 %v588, %v587
      %v598 = vpack.c.b16 %v590, %v589
      %607 = vmatprep.subr.bf16.mxu0 0
      %608 = vmatpush1.bf16.msra.mxu0 %v598
      %609 = vmatprep.subr.bf16.mxu0 0
      %610 = vmatpush1.bf16.msra.mxu0 %v597
      %611 = vmatprep.subr.bf16.mxu0 0
      %612 = vmatpush1.bf16.msra.mxu0 %v596
      %613 = vmatprep.subr.bf16.mxu0 0
      %614 = vmatpush1.bf16.msra.mxu0 %v595
      %615 = vmatprep.subr.bf16.mxu0 0
      %616 = vmatpush1.bf16.msra.mxu0 %v594
      %617 = vmatprep.subr.bf16.mxu0 0
      %618 = vmatpush1.bf16.msra.mxu0 %v593
      %619 = vmatprep.subr.bf16.mxu0 0
      %620 = vmatpush1.bf16.msra.mxu0 %v592
      %621 = vmatprep.subr.bf16.mxu0 0
      %622 = vmatpush1.bf16.msra.mxu0 %v591
      %623 = vmatprep.subr.bf16.mxu0 0
      %624 = vmatpush2.bf16.msra.mxu0 0
      %625 = vmatprep.subr.bf16.mxu0 0
      %626 = vmatpush2.bf16.msra.mxu0 0
      %627 = vmatprep.subr.bf16.mxu0 0
      %628 = vmatpush2.bf16.msra.mxu0 0
      %629 = vmatprep.subr.bf16.mxu0 0
      %630 = vmatpush2.bf16.msra.mxu0 0
      %631 = vmatprep.subr.bf16.mxu0 0
      %632 = vmatpush2.bf16.msra.mxu0 0
      %633 = vmatprep.subr.bf16.mxu0 0
      %634 = vmatpush2.bf16.msra.mxu0 0
      %635 = vmatprep.subr.bf16.mxu0 0
      %636 = vmatpush2.bf16.msra.mxu0 0
      %637 = vmatprep.subr.bf16.mxu0 0
      %638 = vmatpush2.bf16.msra.mxu0 0
      %639 = vmatprep.mubr.bf16.mxu0 0
      %640 = vmatmul.mubr.bf16.gmra.mxu0 %v535
      %v641 = vpop.f32.mrf.mxu0
      %v642 = vadd.f32 %v557, %v641
      %v643 = vpop.f32.mrf.mxu0
      %v644 = vpop.f32.mrf.mxu0
      %v645 = vpop.f32.mrf.mxu0
      %646 = vdwg.mxu0
      %v647 = vmax.f32 %v642, 0.0
      %v648 = vpack.c.bf16 %v647, %v647
      %v649 = vld [vmem:[%s6] sm:$0xf]
      %v650 = vld [vmem:[%s6 + $0x4] sm:$0xf]
      %v651 = vld [vmem:[%s6 + $0x8] sm:$0xf]
      %v652 = vld [vmem:[%s6 + $0xc] sm:$0xf]
      %v653 = vld [vmem:[%s8] sm:$0x1]
      %v655 = vlaneseq
      %v656 = vshrl.u32 %v655, 7
      %v657 = vsub.s32 0, %v656
      %v658 = vrot.slane %v653, %v657
      %v664 = vunpack.c.l.b16 %v649
      %v665 = vunpack.c.l.b16 %v650
      %v666 = vunpack.c.l.b16 %v651
      %v667 = vunpack.c.l.b16 %v652
      %v668 = vpack.c.b16 %v665, %v664
      %v669 = vpack.c.b16 %v667, %v666
      %vm672 = vcmask 261120
      %v674 = vsel %vm672, %v648, 0
      %676 = vmatprep.subr.bf16.mxu0 0
      %677 = vmatpush1.bf16.msra.mxu0 0
      %678 = vmatprep.subr.bf16.mxu0 0
      %679 = vmatpush1.bf16.msra.mxu0 0
      %680 = vmatprep.subr.bf16.mxu0 0
      %681 = vmatpush1.bf16.msra.mxu0 0
      %682 = vmatprep.subr.bf16.mxu0 0
      %683 = vmatpush1.bf16.msra.mxu0 0
      %684 = vmatprep.subr.bf16.mxu0 0
      %685 = vmatpush1.bf16.msra.mxu0 0
      %686 = vmatprep.subr.bf16.mxu0 0
      %687 = vmatpush1.bf16.msra.mxu0 0
      %688 = vmatprep.subr.bf16.mxu0 0
      %689 = vmatpush1.bf16.msra.mxu0 %v669
      %690 = vmatprep.subr.bf16.mxu0 0
      %691 = vmatpush1.bf16.msra.mxu0 %v668
      %692 = vmatprep.subr.bf16.mxu0 0
      %693 = vmatpush2.bf16.msra.mxu0 0
      %694 = vmatprep.subr.bf16.mxu0 0
      %695 = vmatpush2.bf16.msra.mxu0 0
      %696 = vmatprep.subr.bf16.mxu0 0
      %697 = vmatpush2.bf16.msra.mxu0 0
      %698 = vmatprep.subr.bf16.mxu0 0
      %699 = vmatpush2.bf16.msra.mxu0 0
      %700 = vmatprep.subr.bf16.mxu0 0
      %701 = vmatpush2.bf16.msra.mxu0 0
      %702 = vmatprep.subr.bf16.mxu0 0
      %703 = vmatpush2.bf16.msra.mxu0 0
      %704 = vmatprep.subr.bf16.mxu0 0
      %705 = vmatpush2.bf16.msra.mxu0 0
      %706 = vmatprep.subr.bf16.mxu0 0
      %707 = vmatpush2.bf16.msra.mxu0 0
      %708 = vmatprep.mubr.bf16.mxu0 0
      %709 = vmatmul.mubr.bf16.gmra.mxu0 %v674
      %v710 = vpop.f32.mrf.mxu0
      %v711 = vadd.f32 %v658, %v710
      %v712 = vpop.f32.mrf.mxu0
      %v713 = vpop.f32.mrf.mxu0
      %v714 = vpop.f32.mrf.mxu0
      %715 = vdwg.mxu0
      %v716 = vpack.c.bf16 %v474, %v474
      %v717 = vld [vmem:[%s7] sm:$0xf]
      %v718 = vld [vmem:[%s7 + $0x4] sm:$0xf]
      %v719 = vld [vmem:[%s7 + $0x8] sm:$0xf]
      %v720 = vld [vmem:[%s7 + $0xc] sm:$0xf]
      %v721 = vld [vmem:[%s9] sm:$0x1]
      %v723 = vlaneseq
      %v724 = vshrl.u32 %v723, 7
      %v725 = vsub.s32 0, %v724
      %v726 = vrot.slane %v721, %v725
      %v732 = vunpack.c.l.b16 %v717
      %v733 = vunpack.c.l.b16 %v718
      %v734 = vunpack.c.l.b16 %v719
      %v735 = vunpack.c.l.b16 %v720
      %v736 = vpack.c.b16 %v733, %v732
      %v737 = vpack.c.b16 %v735, %v734
      %v741 = vsel %vm672, %v716, 0
      %743 = vmatprep.subr.bf16.mxu0 0
      %744 = vmatpush1.bf16.msra.mxu0 0
      %745 = vmatprep.subr.bf16.mxu0 0
      %746 = vmatpush1.bf16.msra.mxu0 0
      %747 = vmatprep.subr.bf16.mxu0 0
      %748 = vmatpush1.bf16.msra.mxu0 0
      %749 = vmatprep.subr.bf16.mxu0 0
      %750 = vmatpush1.bf16.msra.mxu0 0
      %751 = vmatprep.subr.bf16.mxu0 0
      %752 = vmatpush1.bf16.msra.mxu0 0
      %753 = vmatprep.subr.bf16.mxu0 0
      %754 = vmatpush1.bf16.msra.mxu0 0
      %755 = vmatprep.subr.bf16.mxu0 0
      %756 = vmatpush1.bf16.msra.mxu0 %v737
      %757 = vmatprep.subr.bf16.mxu0 0
      %758 = vmatpush1.bf16.msra.mxu0 %v736
      %759 = vmatprep.subr.bf16.mxu0 0
      %760 = vmatpush2.bf16.msra.mxu0 0
      %761 = vmatprep.subr.bf16.mxu0 0
      %762 = vmatpush2.bf16.msra.mxu0 0
      %763 = vmatprep.subr.bf16.mxu0 0
      %764 = vmatpush2.bf16.msra.mxu0 0
      %765 = vmatprep.subr.bf16.mxu0 0
      %766 = vmatpush2.bf16.msra.mxu0 0
      %767 = vmatprep.subr.bf16.mxu0 0
      %768 = vmatpush2.bf16.msra.mxu0 0
      %769 = vmatprep.subr.bf16.mxu0 0
      %770 = vmatpush2.bf16.msra.mxu0 0
      %771 = vmatprep.subr.bf16.mxu0 0
      %772 = vmatpush2.bf16.msra.mxu0 0
      %773 = vmatprep.subr.bf16.mxu0 0
      %774 = vmatpush2.bf16.msra.mxu0 0
      %775 = vmatprep.mubr.bf16.mxu0 0
      %776 = vmatmul.mubr.bf16.gmra.mxu0 %v741
      %v777 = vpop.f32.mrf.mxu0
      %v778 = vadd.f32 %v726, %v777
      %v779 = vpop.f32.mrf.mxu0
      %v780 = vpop.f32.mrf.mxu0
      %v781 = vpop.f32.mrf.mxu0
      %782 = vdwg.mxu0
      %v783 = vadd.f32 %v711, %v778
      %v784 = vxor.u32 %v783, 2147483648
      %v785 = vmul.f32 %v784, 1.442695
      %v786 = vpow.pop %v785
      %v787 = vadd.f32 %v786, 1.0
      %v788 = vrcp.pop %v787
      %v789 = vmul.f32 1.0, %v788
      %791 = vrot.lane.b32.xlu0 %v778, 64
      %v792 = vpop.permute.xlu0 %791
      %v794 = vmul.f32 %v789, %v792
      %796 = vrot.lane.b32.xlu0 %v794, 64
      %v797 = vpop.permute.xlu0 %796
      %v799 = vadd.f32 %v711, %v797
      %v800 = vtanh.pop %v799
      %v801 = vsub.f32 1.0, %v789
      %803 = vrot.lane.b32.xlu0 %v800, 96
      %v804 = vpop.permute.xlu0 %803
      %v806 = vmul.f32 %v801, %v804
      %808 = vrot.lane.b32.xlu0 %v474, 32
      %v809 = vpop.permute.xlu0 %808
      %v811 = vmul.f32 %v789, %v809
      %v812 = vadd.f32 %v806, %v811
      %v813 = vpack.c.bf16 %v812, %v812
      %v814 = vld [vmem:[%s10] sm:$0xf]
      %v815 = vld [vmem:[%s10 + $0x4] sm:$0xf]
      %v816 = vld [vmem:[%s10 + $0x8] sm:$0xf]
      %v817 = vld [vmem:[%s10 + $0xc] sm:$0xf]
      %v818 = vld [vmem:[%s11] sm:$0x1]
      %v820 = vlaneseq
      %v821 = vshrl.u32 %v820, 7
      %v822 = vsub.s32 0, %v821
      %v823 = vrot.slane %v818, %v822
      %826 = vrot.lane.b32.xlu0 %v813, 96
      %v827 = vpop.permute.xlu0 %826
      %v832 = vunpack.c.l.b16 %v814
      %v833 = vunpack.c.l.b16 %v815
      %v834 = vunpack.c.l.b16 %v816
      %v835 = vunpack.c.l.b16 %v817
      %v836 = vpack.c.b16 %v833, %v832
      %v837 = vpack.c.b16 %v835, %v834
      %v841 = vsel %vm672, %v827, 0
      %843 = vmatprep.subr.bf16.mxu0 0
      %844 = vmatpush1.bf16.msra.mxu0 0
      %845 = vmatprep.subr.bf16.mxu0 0
      %846 = vmatpush1.bf16.msra.mxu0 0
      %847 = vmatprep.subr.bf16.mxu0 0
      %848 = vmatpush1.bf16.msra.mxu0 0
      %849 = vmatprep.subr.bf16.mxu0 0
      %850 = vmatpush1.bf16.msra.mxu0 0
      %851 = vmatprep.subr.bf16.mxu0 0
      %852 = vmatpush1.bf16.msra.mxu0 0
      %853 = vmatprep.subr.bf16.mxu0 0
      %854 = vmatpush1.bf16.msra.mxu0 0
      %855 = vmatprep.subr.bf16.mxu0 0
      %856 = vmatpush1.bf16.msra.mxu0 %v837
      %857 = vmatprep.subr.bf16.mxu0 0
      %858 = vmatpush1.bf16.msra.mxu0 %v836
      %859 = vmatprep.subr.bf16.mxu0 0
      %860 = vmatpush2.bf16.msra.mxu0 0
      %861 = vmatprep.subr.bf16.mxu0 0
      %862 = vmatpush2.bf16.msra.mxu0 0
      %863 = vmatprep.subr.bf16.mxu0 0
      %864 = vmatpush2.bf16.msra.mxu0 0
      %865 = vmatprep.subr.bf16.mxu0 0
      %866 = vmatpush2.bf16.msra.mxu0 0
      %867 = vmatprep.subr.bf16.mxu0 0
      %868 = vmatpush2.bf16.msra.mxu0 0
      %869 = vmatprep.subr.bf16.mxu0 0
      %870 = vmatpush2.bf16.msra.mxu0 0
      %871 = vmatprep.subr.bf16.mxu0 0
      %872 = vmatpush2.bf16.msra.mxu0 0
      %873 = vmatprep.subr.bf16.mxu0 0
      %874 = vmatpush2.bf16.msra.mxu0 0
      %875 = vmatprep.mubr.bf16.mxu0 0
      %876 = vmatmul.mubr.bf16.gmra.mxu0 %v841
      %v877 = vpop.f32.mrf.mxu0
      %v878 = vadd.f32 %v823, %v877
      %v879 = vpop.f32.mrf.mxu0
      %v880 = vpop.f32.mrf.mxu0
      %v881 = vpop.f32.mrf.mxu0
      %882 = vdwg.mxu0
      %v884 = vcombine.high %v878, %v878
      %v886 = vunpack.c.l.s4 1966171168
      %v887 = vunpack.c.0.s8 %v886
      %v888 = vlaneseq
      %v889 = vshrl.u32 %v888, 7
      %v890 = vsub.s32 %v887, %v889
      %v891 = vrot.slane %v878, %v890
      %v893 = vunpack.c.l.s4 1966171168
      %v894 = vunpack.c.0.s8 %v893
      %v895 = vlaneseq
      %v896 = vshrl.u32 %v895, 7
      %v897 = vsub.s32 %v894, %v896
      %v898 = vrot.slane %v884, %v897
      %v899 = vcombine.high %v891, %v891
      %v900 = vcombine.high %v898, %v898
      %v902 = vunpack.c.l.s4 1966171168
      %v903 = vunpack.c.0.s8 %v902
      %v904 = vlaneseq
      %v905 = vshrl.u32 %v904, 7
      %v906 = vsub.s32 %v903, %v905
      %v907 = vrot.slane %v891, %v906
      %v909 = vunpack.c.l.s4 1966171168
      %v910 = vunpack.c.0.s8 %v909
      %v911 = vlaneseq
      %v912 = vshrl.u32 %v911, 7
      %v913 = vsub.s32 %v910, %v912
      %v914 = vrot.slane %v898, %v913
      %v916 = vunpack.c.l.s4 1966171168
      %v917 = vunpack.c.0.s8 %v916
      %v918 = vlaneseq
      %v919 = vshrl.u32 %v918, 7
      %v920 = vsub.s32 %v917, %v919
      %v921 = vrot.slane %v899, %v920
      %v923 = vunpack.c.l.s4 1966171168
      %v924 = vunpack.c.0.s8 %v923
      %v925 = vlaneseq
      %v926 = vshrl.u32 %v925, 7
      %v927 = vsub.s32 %v924, %v926
      %v928 = vrot.slane %v900, %v927
      %v929 = vcombine.high %v907, %v907
      %v930 = vcombine.high %v914, %v914
      %v931 = vcombine.high %v921, %v921
      %v932 = vcombine.high %v928, %v928
      %vm941 = vcmask 57344
      %942 = vst.msk [vmem:[%s467] sm:$0x1] %vm941, %v907
      %943 = vst.msk [vmem:[%s467 + $0x4] sm:$0x1] %vm941, %v921
      %944 = vst.msk [vmem:[%s467 + $0x8] sm:$0x1] %vm941, %v929
      %945 = vst.msk [vmem:[%s467 + $0xc] sm:$0x1] %vm941, %v931
      %946 = vst.msk [vmem:[%s467 + $0x10] sm:$0x1] %vm941, %v914
      %947 = vst.msk [vmem:[%s467 + $0x14] sm:$0x1] %vm941, %v928
      %948 = vst.msk [vmem:[%s467 + $0x18] sm:$0x1] %vm941, %v930
      %949 = vst.msk [vmem:[%s467 + $0x1c] sm:$0x1] %vm941, %v932
      %s950 = scalar_lea.vmem %s457, 4
      %v951 = vld [vmem:[%s950] sm:$0xf]
      %s952 = scalar_lea.vmem %s462, 8
      %v953 = vld [vmem:[%s952] sm:$0xff]
      %s954 = scalar_lea.vmem %s2, 8
      %v955 = vld [vmem:[%s954] sm:$0xf]
      %v956 = vld [vmem:[%s954 + $0x4] sm:$0xf]
      %s957 = scalar_lea.vmem %s3, 1
      %v958 = vld [vmem:[%s957] sm:$0x1]
      %v960 = vlaneseq
      %v961 = vshrl.u32 %v960, 7
      %v962 = vsub.s32 0, %v961
      %v963 = vrot.slane %v958, %v962
      %v967 = vunpack.c.l.b16 %v955
      %v968 = vunpack.c.l.b16 %v956
      %v969 = vpack.c.b16 %v968, %v967
      %v972 = vsel %vm490, %v951, 0
      %974 = vmatprep.subr.bf16.mxu0 0
      %975 = vmatpush1.bf16.msra.mxu0 0
      %976 = vmatprep.subr.bf16.mxu0 0
      %977 = vmatpush1.bf16.msra.mxu0 0
      %978 = vmatprep.subr.bf16.mxu0 0
      %979 = vmatpush1.bf16.msra.mxu0 0
      %980 = vmatprep.subr.bf16.mxu0 0
      %981 = vmatpush1.bf16.msra.mxu0 0
      %982 = vmatprep.subr.bf16.mxu0 0
      %983 = vmatpush1.bf16.msra.mxu0 0
      %984 = vmatprep.subr.bf16.mxu0 0
      %985 = vmatpush1.bf16.msra.mxu0 0
      %986 = vmatprep.subr.bf16.mxu0 0
      %987 = vmatpush1.bf16.msra.mxu0 0
      %988 = vmatprep.subr.bf16.mxu0 0
      %989 = vmatpush1.bf16.msra.mxu0 %v969
      %990 = vmatprep.subr.bf16.mxu0 0
      %991 = vmatpush2.bf16.msra.mxu0 0
      %992 = vmatprep.subr.bf16.mxu0 0
      %993 = vmatpush2.bf16.msra.mxu0 0
      %994 = vmatprep.subr.bf16.mxu0 0
      %995 = vmatpush2.bf16.msra.mxu0 0
      %996 = vmatprep.subr.bf16.mxu0 0
      %997 = vmatpush2.bf16.msra.mxu0 0
      %998 = vmatprep.subr.bf16.mxu0 0
      %999 = vmatpush2.bf16.msra.mxu0 0
      %1000 = vmatprep.subr.bf16.mxu0 0
      %1001 = vmatpush2.bf16.msra.mxu0 0
      %1002 = vmatprep.subr.bf16.mxu0 0
      %1003 = vmatpush2.bf16.msra.mxu0 0
      %1004 = vmatprep.subr.bf16.mxu0 0
      %1005 = vmatpush2.bf16.msra.mxu0 0
      %1006 = vmatprep.mubr.bf16.mxu0 0
      %1007 = vmatmul.mubr.bf16.gmra.mxu0 %v972
      %v1008 = vpop.f32.mrf.mxu0
      %v1009 = vadd.f32 %v963, %v1008
      %v1010 = vpop.f32.mrf.mxu0
      %v1011 = vpop.f32.mrf.mxu0
      %v1012 = vpop.f32.mrf.mxu0
      %1013 = vdwg.mxu0
      %v1014 = vmax.f32 %v1009, 0.0
      %v1015 = vpack.c.bf16 %v1014, %v1014
      %s1016 = scalar_lea.vmem %s4, 64
      %v1017 = vld [vmem:[%s1016] sm:$0xf]
      %v1018 = vld [vmem:[%s1016 + $0x4] sm:$0xf]
      %v1019 = vld [vmem:[%s1016 + $0x8] sm:$0xf]
      %v1020 = vld [vmem:[%s1016 + $0xc] sm:$0xf]
      %v1021 = vld [vmem:[%s1016 + $0x10] sm:$0xf]
      %v1022 = vld [vmem:[%s1016 + $0x14] sm:$0xf]
      %v1023 = vld [vmem:[%s1016 + $0x18] sm:$0xf]
      %v1024 = vld [vmem:[%s1016 + $0x1c] sm:$0xf]
      %v1025 = vld [vmem:[%s1016 + $0x20] sm:$0xf]
      %v1026 = vld [vmem:[%s1016 + $0x24] sm:$0xf]
      %v1027 = vld [vmem:[%s1016 + $0x28] sm:$0xf]
      %v1028 = vld [vmem:[%s1016 + $0x2c] sm:$0xf]
      %v1029 = vld [vmem:[%s1016 + $0x30] sm:$0xf]
      %v1030 = vld [vmem:[%s1016 + $0x34] sm:$0xf]
      %v1031 = vld [vmem:[%s1016 + $0x38] sm:$0xf]
      %v1032 = vld [vmem:[%s1016 + $0x3c] sm:$0xf]
      %s1033 = scalar_lea.vmem %s5, 1
      %v1034 = vld [vmem:[%s1033] sm:$0x1]
      %v1036 = vlaneseq
      %v1037 = vshrl.u32 %v1036, 7
      %v1038 = vsub.s32 0, %v1037
      %v1039 = vrot.slane %v1034, %v1038
      %v1057 = vunpack.c.l.b16 %v1017
      %v1058 = vunpack.c.l.b16 %v1018
      %v1059 = vunpack.c.l.b16 %v1019
      %v1060 = vunpack.c.l.b16 %v1020
      %v1061 = vunpack.c.l.b16 %v1021
      %v1062 = vunpack.c.l.b16 %v1022
      %v1063 = vunpack.c.l.b16 %v1023
      %v1064 = vunpack.c.l.b16 %v1024
      %v1065 = vunpack.c.l.b16 %v1025
      %v1066 = vunpack.c.l.b16 %v1026
      %v1067 = vunpack.c.l.b16 %v1027
      %v1068 = vunpack.c.l.b16 %v1028
      %v1069 = vunpack.c.l.b16 %v1029
      %v1070 = vunpack.c.l.b16 %v1030
      %v1071 = vunpack.c.l.b16 %v1031
      %v1072 = vunpack.c.l.b16 %v1032
      %v1073 = vpack.c.b16 %v1058, %v1057
      %v1074 = vpack.c.b16 %v1060, %v1059
      %v1075 = vpack.c.b16 %v1062, %v1061
      %v1076 = vpack.c.b16 %v1064, %v1063
      %v1077 = vpack.c.b16 %v1066, %v1065
      %v1078 = vpack.c.b16 %v1068, %v1067
      %v1079 = vpack.c.b16 %v1070, %v1069
      %v1080 = vpack.c.b16 %v1072, %v1071
      %1089 = vmatprep.subr.bf16.mxu0 0
      %1090 = vmatpush1.bf16.msra.mxu0 %v1080
      %1091 = vmatprep.subr.bf16.mxu0 0
      %1092 = vmatpush1.bf16.msra.mxu0 %v1079
      %1093 = vmatprep.subr.bf16.mxu0 0
      %1094 = vmatpush1.bf16.msra.mxu0 %v1078
      %1095 = vmatprep.subr.bf16.mxu0 0
      %1096 = vmatpush1.bf16.msra.mxu0 %v1077
      %1097 = vmatprep.subr.bf16.mxu0 0
      %1098 = vmatpush1.bf16.msra.mxu0 %v1076
      %1099 = vmatprep.subr.bf16.mxu0 0
      %1100 = vmatpush1.bf16.msra.mxu0 %v1075
      %1101 = vmatprep.subr.bf16.mxu0 0
      %1102 = vmatpush1.bf16.msra.mxu0 %v1074
      %1103 = vmatprep.subr.bf16.mxu0 0
      %1104 = vmatpush1.bf16.msra.mxu0 %v1073
      %1105 = vmatprep.subr.bf16.mxu0 0
      %1106 = vmatpush2.bf16.msra.mxu0 0
      %1107 = vmatprep.subr.bf16.mxu0 0
      %1108 = vmatpush2.bf16.msra.mxu0 0
      %1109 = vmatprep.subr.bf16.mxu0 0
      %1110 = vmatpush2.bf16.msra.mxu0 0
      %1111 = vmatprep.subr.bf16.mxu0 0
      %1112 = vmatpush2.bf16.msra.mxu0 0
      %1113 = vmatprep.subr.bf16.mxu0 0
      %1114 = vmatpush2.bf16.msra.mxu0 0
      %1115 = vmatprep.subr.bf16.mxu0 0
      %1116 = vmatpush2.bf16.msra.mxu0 0
      %1117 = vmatprep.subr.bf16.mxu0 0
      %1118 = vmatpush2.bf16.msra.mxu0 0
      %1119 = vmatprep.subr.bf16.mxu0 0
      %1120 = vmatpush2.bf16.msra.mxu0 0
      %1121 = vmatprep.mubr.bf16.mxu0 0
      %1122 = vmatmul.mubr.bf16.gmra.mxu0 %v1015
      %v1123 = vpop.f32.mrf.mxu0
      %v1124 = vadd.f32 %v1039, %v1123
      %v1125 = vpop.f32.mrf.mxu0
      %v1126 = vpop.f32.mrf.mxu0
      %v1127 = vpop.f32.mrf.mxu0
      %1128 = vdwg.mxu0
      %v1129 = vmax.f32 %v1124, 0.0
      %v1130 = vpack.c.bf16 %v1129, %v1129
      %s1131 = scalar_lea.vmem %s6, 16
      %v1132 = vld [vmem:[%s1131] sm:$0xf]
      %v1133 = vld [vmem:[%s1131 + $0x4] sm:$0xf]
      %v1134 = vld [vmem:[%s1131 + $0x8] sm:$0xf]
      %v1135 = vld [vmem:[%s1131 + $0xc] sm:$0xf]
      %s1136 = scalar_lea.vmem %s8, 1
      %v1137 = vld [vmem:[%s1136] sm:$0x1]
      %v1139 = vlaneseq
      %v1140 = vshrl.u32 %v1139, 7
      %v1141 = vsub.s32 0, %v1140
      %v1142 = vrot.slane %v1137, %v1141
      %v1148 = vunpack.c.l.b16 %v1132
      %v1149 = vunpack.c.l.b16 %v1133
      %v1150 = vunpack.c.l.b16 %v1134
      %v1151 = vunpack.c.l.b16 %v1135
      %v1152 = vpack.c.b16 %v1149, %v1148
      %v1153 = vpack.c.b16 %v1151, %v1150
      %v1157 = vsel %vm672, %v1130, 0
      %1159 = vmatprep.subr.bf16.mxu0 0
      %1160 = vmatpush1.bf16.msra.mxu0 0
      %1161 = vmatprep.subr.bf16.mxu0 0
      %1162 = vmatpush1.bf16.msra.mxu0 0
      %1163 = vmatprep.subr.bf16.mxu0 0
      %1164 = vmatpush1.bf16.msra.mxu0 0
      %1165 = vmatprep.subr.bf16.mxu0 0
      %1166 = vmatpush1.bf16.msra.mxu0 0
      %1167 = vmatprep.subr.bf16.mxu0 0
      %1168 = vmatpush1.bf16.msra.mxu0 0
      %1169 = vmatprep.subr.bf16.mxu0 0
      %1170 = vmatpush1.bf16.msra.mxu0 0
      %1171 = vmatprep.subr.bf16.mxu0 0
      %1172 = vmatpush1.bf16.msra.mxu0 %v1153
      %1173 = vmatprep.subr.bf16.mxu0 0
      %1174 = vmatpush1.bf16.msra.mxu0 %v1152
      %1175 = vmatprep.subr.bf16.mxu0 0
      %1176 = vmatpush2.bf16.msra.mxu0 0
      %1177 = vmatprep.subr.bf16.mxu0 0
      %1178 = vmatpush2.bf16.msra.mxu0 0
      %1179 = vmatprep.subr.bf16.mxu0 0
      %1180 = vmatpush2.bf16.msra.mxu0 0
      %1181 = vmatprep.subr.bf16.mxu0 0
      %1182 = vmatpush2.bf16.msra.mxu0 0
      %1183 = vmatprep.subr.bf16.mxu0 0
      %1184 = vmatpush2.bf16.msra.mxu0 0
      %1185 = vmatprep.subr.bf16.mxu0 0
      %1186 = vmatpush2.bf16.msra.mxu0 0
      %1187 = vmatprep.subr.bf16.mxu0 0
      %1188 = vmatpush2.bf16.msra.mxu0 0
      %1189 = vmatprep.subr.bf16.mxu0 0
      %1190 = vmatpush2.bf16.msra.mxu0 0
      %1191 = vmatprep.mubr.bf16.mxu0 0
      %1192 = vmatmul.mubr.bf16.gmra.mxu0 %v1157
      %v1193 = vpop.f32.mrf.mxu0
      %v1194 = vadd.f32 %v1142, %v1193
      %v1195 = vpop.f32.mrf.mxu0
      %v1196 = vpop.f32.mrf.mxu0
      %v1197 = vpop.f32.mrf.mxu0
      %1198 = vdwg.mxu0
      %v1199 = vpack.c.bf16 %v953, %v953
      %s1200 = scalar_lea.vmem %s7, 16
      %v1201 = vld [vmem:[%s1200] sm:$0xf]
      %v1202 = vld [vmem:[%s1200 + $0x4] sm:$0xf]
      %v1203 = vld [vmem:[%s1200 + $0x8] sm:$0xf]
      %v1204 = vld [vmem:[%s1200 + $0xc] sm:$0xf]
      %s1205 = scalar_lea.vmem %s9, 1
      %v1206 = vld [vmem:[%s1205] sm:$0x1]
      %v1208 = vlaneseq
      %v1209 = vshrl.u32 %v1208, 7
      %v1210 = vsub.s32 0, %v1209
      %v1211 = vrot.slane %v1206, %v1210
      %v1217 = vunpack.c.l.b16 %v1201
      %v1218 = vunpack.c.l.b16 %v1202
      %v1219 = vunpack.c.l.b16 %v1203
      %v1220 = vunpack.c.l.b16 %v1204
      %v1221 = vpack.c.b16 %v1218, %v1217
      %v1222 = vpack.c.b16 %v1220, %v1219
      %v1226 = vsel %vm672, %v1199, 0
      %1228 = vmatprep.subr.bf16.mxu0 0
      %1229 = vmatpush1.bf16.msra.mxu0 0
      %1230 = vmatprep.subr.bf16.mxu0 0
      %1231 = vmatpush1.bf16.msra.mxu0 0
      %1232 = vmatprep.subr.bf16.mxu0 0
      %1233 = vmatpush1.bf16.msra.mxu0 0
      %1234 = vmatprep.subr.bf16.mxu0 0
      %1235 = vmatpush1.bf16.msra.mxu0 0
      %1236 = vmatprep.subr.bf16.mxu0 0
      %1237 = vmatpush1.bf16.msra.mxu0 0
      %1238 = vmatprep.subr.bf16.mxu0 0
      %1239 = vmatpush1.bf16.msra.mxu0 0
      %1240 = vmatprep.subr.bf16.mxu0 0
      %1241 = vmatpush1.bf16.msra.mxu0 %v1222
      %1242 = vmatprep.subr.bf16.mxu0 0
      %1243 = vmatpush1.bf16.msra.mxu0 %v1221
      %1244 = vmatprep.subr.bf16.mxu0 0
      %1245 = vmatpush2.bf16.msra.mxu0 0
      %1246 = vmatprep.subr.bf16.mxu0 0
      %1247 = vmatpush2.bf16.msra.mxu0 0
      %1248 = vmatprep.subr.bf16.mxu0 0
      %1249 = vmatpush2.bf16.msra.mxu0 0
      %1250 = vmatprep.subr.bf16.mxu0 0
      %1251 = vmatpush2.bf16.msra.mxu0 0
      %1252 = vmatprep.subr.bf16.mxu0 0
      %1253 = vmatpush2.bf16.msra.mxu0 0
      %1254 = vmatprep.subr.bf16.mxu0 0
      %1255 = vmatpush2.bf16.msra.mxu0 0
      %1256 = vmatprep.subr.bf16.mxu0 0
      %1257 = vmatpush2.bf16.msra.mxu0 0
      %1258 = vmatprep.subr.bf16.mxu0 0
      %1259 = vmatpush2.bf16.msra.mxu0 0
      %1260 = vmatprep.mubr.bf16.mxu0 0
      %1261 = vmatmul.mubr.bf16.gmra.mxu0 %v1226
      %v1262 = vpop.f32.mrf.mxu0
      %v1263 = vadd.f32 %v1211, %v1262
      %v1264 = vpop.f32.mrf.mxu0
      %v1265 = vpop.f32.mrf.mxu0
      %v1266 = vpop.f32.mrf.mxu0
      %1267 = vdwg.mxu0
      %v1268 = vadd.f32 %v1194, %v1263
      %v1269 = vxor.u32 %v1268, 2147483648
      %v1270 = vmul.f32 %v1269, 1.442695
      %v1271 = vpow.pop %v1270
      %v1272 = vadd.f32 %v1271, 1.0
      %v1273 = vrcp.pop %v1272
      %v1274 = vmul.f32 1.0, %v1273
      %1276 = vrot.lane.b32.xlu0 %v1263, 64
      %v1277 = vpop.permute.xlu0 %1276
      %v1279 = vmul.f32 %v1274, %v1277
      %1281 = vrot.lane.b32.xlu0 %v1279, 64
      %v1282 = vpop.permute.xlu0 %1281
      %v1284 = vadd.f32 %v1194, %v1282
      %v1285 = vtanh.pop %v1284
      %v1286 = vsub.f32 1.0, %v1274
      %1288 = vrot.lane.b32.xlu0 %v1285, 96
      %v1289 = vpop.permute.xlu0 %1288
      %v1291 = vmul.f32 %v1286, %v1289
      %1293 = vrot.lane.b32.xlu0 %v953, 32
      %v1294 = vpop.permute.xlu0 %1293
      %v1296 = vmul.f32 %v1274, %v1294
      %v1297 = vadd.f32 %v1291, %v1296
      %v1298 = vpack.c.bf16 %v1297, %v1297
      %s1299 = scalar_lea.vmem %s10, 16
      %v1300 = vld [vmem:[%s1299] sm:$0xf]
      %v1301 = vld [vmem:[%s1299 + $0x4] sm:$0xf]
      %v1302 = vld [vmem:[%s1299 + $0x8] sm:$0xf]
      %v1303 = vld [vmem:[%s1299 + $0xc] sm:$0xf]
      %s1304 = scalar_lea.vmem %s11, 1
      %v1305 = vld [vmem:[%s1304] sm:$0x1]
      %v1307 = vlaneseq
      %v1308 = vshrl.u32 %v1307, 7
      %v1309 = vsub.s32 0, %v1308
      %v1310 = vrot.slane %v1305, %v1309
      %1313 = vrot.lane.b32.xlu0 %v1298, 96
      %v1314 = vpop.permute.xlu0 %1313
      %v1319 = vunpack.c.l.b16 %v1300
      %v1320 = vunpack.c.l.b16 %v1301
      %v1321 = vunpack.c.l.b16 %v1302
      %v1322 = vunpack.c.l.b16 %v1303
      %v1323 = vpack.c.b16 %v1320, %v1319
      %v1324 = vpack.c.b16 %v1322, %v1321
      %v1328 = vsel %vm672, %v1314, 0
      %1330 = vmatprep.subr.bf16.mxu0 0
      %1331 = vmatpush1.bf16.msra.mxu0 0
      %1332 = vmatprep.subr.bf16.mxu0 0
      %1333 = vmatpush1.bf16.msra.mxu0 0
      %1334 = vmatprep.subr.bf16.mxu0 0
      %1335 = vmatpush1.bf16.msra.mxu0 0
      %1336 = vmatprep.subr.bf16.mxu0 0
      %1337 = vmatpush1.bf16.msra.mxu0 0
      %1338 = vmatprep.subr.bf16.mxu0 0
      %1339 = vmatpush1.bf16.msra.mxu0 0
      %1340 = vmatprep.subr.bf16.mxu0 0
      %1341 = vmatpush1.bf16.msra.mxu0 0
      %1342 = vmatprep.subr.bf16.mxu0 0
      %1343 = vmatpush1.bf16.msra.mxu0 %v1324
      %1344 = vmatprep.subr.bf16.mxu0 0
      %1345 = vmatpush1.bf16.msra.mxu0 %v1323
      %1346 = vmatprep.subr.bf16.mxu0 0
      %1347 = vmatpush2.bf16.msra.mxu0 0
      %1348 = vmatprep.subr.bf16.mxu0 0
      %1349 = vmatpush2.bf16.msra.mxu0 0
      %1350 = vmatprep.subr.bf16.mxu0 0
      %1351 = vmatpush2.bf16.msra.mxu0 0
      %1352 = vmatprep.subr.bf16.mxu0 0
      %1353 = vmatpush2.bf16.msra.mxu0 0
      %1354 = vmatprep.subr.bf16.mxu0 0
      %1355 = vmatpush2.bf16.msra.mxu0 0
      %1356 = vmatprep.subr.bf16.mxu0 0
      %1357 = vmatpush2.bf16.msra.mxu0 0
      %1358 = vmatprep.subr.bf16.mxu0 0
      %1359 = vmatpush2.bf16.msra.mxu0 0
      %1360 = vmatprep.subr.bf16.mxu0 0
      %1361 = vmatpush2.bf16.msra.mxu0 0
      %1362 = vmatprep.mubr.bf16.mxu0 0
      %1363 = vmatmul.mubr.bf16.gmra.mxu0 %v1328
      %v1364 = vpop.f32.mrf.mxu0
      %v1365 = vadd.f32 %v1310, %v1364
      %v1366 = vpop.f32.mrf.mxu0
      %v1367 = vpop.f32.mrf.mxu0
      %v1368 = vpop.f32.mrf.mxu0
      %1369 = vdwg.mxu0
      %v1371 = vcombine.high %v1365, %v1365
      %v1373 = vunpack.c.l.s4 1966171168
      %v1374 = vunpack.c.0.s8 %v1373
      %v1375 = vlaneseq
      %v1376 = vshrl.u32 %v1375, 7
      %v1377 = vsub.s32 %v1374, %v1376
      %v1378 = vrot.slane %v1365, %v1377
      %v1380 = vunpack.c.l.s4 1966171168
      %v1381 = vunpack.c.0.s8 %v1380
      %v1382 = vlaneseq
      %v1383 = vshrl.u32 %v1382, 7
      %v1384 = vsub.s32 %v1381, %v1383
      %v1385 = vrot.slane %v1371, %v1384
      %v1386 = vcombine.high %v1378, %v1378
      %v1387 = vcombine.high %v1385, %v1385
      %v1389 = vunpack.c.l.s4 1966171168
      %v1390 = vunpack.c.0.s8 %v1389
      %v1391 = vlaneseq
      %v1392 = vshrl.u32 %v1391, 7
      %v1393 = vsub.s32 %v1390, %v1392
      %v1394 = vrot.slane %v1378, %v1393
      %v1396 = vunpack.c.l.s4 1966171168
      %v1397 = vunpack.c.0.s8 %v1396
      %v1398 = vlaneseq
      %v1399 = vshrl.u32 %v1398, 7
      %v1400 = vsub.s32 %v1397, %v1399
      %v1401 = vrot.slane %v1385, %v1400
      %v1403 = vunpack.c.l.s4 1966171168
      %v1404 = vunpack.c.0.s8 %v1403
      %v1405 = vlaneseq
      %v1406 = vshrl.u32 %v1405, 7
      %v1407 = vsub.s32 %v1404, %v1406
      %v1408 = vrot.slane %v1386, %v1407
      %v1410 = vunpack.c.l.s4 1966171168
      %v1411 = vunpack.c.0.s8 %v1410
      %v1412 = vlaneseq
      %v1413 = vshrl.u32 %v1412, 7
      %v1414 = vsub.s32 %v1411, %v1413
      %v1415 = vrot.slane %v1387, %v1414
      %v1416 = vcombine.high %v1394, %v1394
      %v1417 = vcombine.high %v1401, %v1401
      %v1418 = vcombine.high %v1408, %v1408
      %v1419 = vcombine.high %v1415, %v1415
      %1428 = vst.msk [vmem:[%s467 + $0x1] sm:$0x1] %vm941, %v1394
      %1429 = vst.msk [vmem:[%s467 + $0x5] sm:$0x1] %vm941, %v1408
      %1430 = vst.msk [vmem:[%s467 + $0x9] sm:$0x1] %vm941, %v1416
      %1431 = vst.msk [vmem:[%s467 + $0xd] sm:$0x1] %vm941, %v1418
      %1432 = vst.msk [vmem:[%s467 + $0x11] sm:$0x1] %vm941, %v1401
      %1433 = vst.msk [vmem:[%s467 + $0x15] sm:$0x1] %vm941, %v1415
      %1434 = vst.msk [vmem:[%s467 + $0x19] sm:$0x1] %vm941, %v1417
      %1435 = vst.msk [vmem:[%s467 + $0x1d] sm:$0x1] %vm941, %v1419
      %s1436 = scalar_lea.vmem %s457, 8
      %v1437 = vld [vmem:[%s1436] sm:$0xf]
      %s1438 = scalar_lea.vmem %s462, 16
      %v1439 = vld [vmem:[%s1438] sm:$0xff]
      %s1440 = scalar_lea.vmem %s2, 16
      %v1441 = vld [vmem:[%s1440] sm:$0xf]
      %v1442 = vld [vmem:[%s1440 + $0x4] sm:$0xf]
      %s1443 = scalar_lea.vmem %s3, 2
      %v1444 = vld [vmem:[%s1443] sm:$0x1]
      %v1446 = vlaneseq
      %v1447 = vshrl.u32 %v1446, 7
      %v1448 = vsub.s32 0, %v1447
      %v1449 = vrot.slane %v1444, %v1448
      %v1453 = vunpack.c.l.b16 %v1441
      %v1454 = vunpack.c.l.b16 %v1442
      %v1455 = vpack.c.b16 %v1454, %v1453
      %v1458 = vsel %vm490, %v1437, 0
      %1460 = vmatprep.subr.bf16.mxu0 0
      %1461 = vmatpush1.bf16.msra.mxu0 0
      %1462 = vmatprep.subr.bf16.mxu0 0
      %1463 = vmatpush1.bf16.msra.mxu0 0
      %1464 = vmatprep.subr.bf16.mxu0 0
      %1465 = vmatpush1.bf16.msra.mxu0 0
      %1466 = vmatprep.subr.bf16.mxu0 0
      %1467 = vmatpush1.bf16.msra.mxu0 0
      %1468 = vmatprep.subr.bf16.mxu0 0
      %1469 = vmatpush1.bf16.msra.mxu0 0
      %1470 = vmatprep.subr.bf16.mxu0 0
      %1471 = vmatpush1.bf16.msra.mxu0 0
      %1472 = vmatprep.subr.bf16.mxu0 0
      %1473 = vmatpush1.bf16.msra.mxu0 0
      %1474 = vmatprep.subr.bf16.mxu0 0
      %1475 = vmatpush1.bf16.msra.mxu0 %v1455
      %1476 = vmatprep.subr.bf16.mxu0 0
      %1477 = vmatpush2.bf16.msra.mxu0 0
      %1478 = vmatprep.subr.bf16.mxu0 0
      %1479 = vmatpush2.bf16.msra.mxu0 0
      %1480 = vmatprep.subr.bf16.mxu0 0
      %1481 = vmatpush2.bf16.msra.mxu0 0
      %1482 = vmatprep.subr.bf16.mxu0 0
      %1483 = vmatpush2.bf16.msra.mxu0 0
      %1484 = vmatprep.subr.bf16.mxu0 0
      %1485 = vmatpush2.bf16.msra.mxu0 0
      %1486 = vmatprep.subr.bf16.mxu0 0
      %1487 = vmatpush2.bf16.msra.mxu0 0
      %1488 = vmatprep.subr.bf16.mxu0 0
      %1489 = vmatpush2.bf16.msra.mxu0 0
      %1490 = vmatprep.subr.bf16.mxu0 0
      %1491 = vmatpush2.bf16.msra.mxu0 0
      %1492 = vmatprep.mubr.bf16.mxu0 0
      %1493 = vmatmul.mubr.bf16.gmra.mxu0 %v1458
      %v1494 = vpop.f32.mrf.mxu0
      %v1495 = vadd.f32 %v1449, %v1494
      %v1496 = vpop.f32.mrf.mxu0
      %v1497 = vpop.f32.mrf.mxu0
      %v1498 = vpop.f32.mrf.mxu0
      %1499 = vdwg.mxu0
      %v1500 = vmax.f32 %v1495, 0.0
      %v1501 = vpack.c.bf16 %v1500, %v1500
      %s1502 = scalar_lea.vmem %s4, 128
      %v1503 = vld [vmem:[%s1502] sm:$0xf]
      %v1504 = vld [vmem:[%s1502 + $0x4] sm:$0xf]
      %v1505 = vld [vmem:[%s1502 + $0x8] sm:$0xf]
      %v1506 = vld [vmem:[%s1502 + $0xc] sm:$0xf]
      %v1507 = vld [vmem:[%s1502 + $0x10] sm:$0xf]
      %v1508 = vld [vmem:[%s1502 + $0x14] sm:$0xf]
      %v1509 = vld [vmem:[%s1502 + $0x18] sm:$0xf]
      %v1510 = vld [vmem:[%s1502 + $0x1c] sm:$0xf]
      %v1511 = vld [vmem:[%s1502 + $0x20] sm:$0xf]
      %v1512 = vld [vmem:[%s1502 + $0x24] sm:$0xf]
      %v1513 = vld [vmem:[%s1502 + $0x28] sm:$0xf]
      %v1514 = vld [vmem:[%s1502 + $0x2c] sm:$0xf]
      %v1515 = vld [vmem:[%s1502 + $0x30] sm:$0xf]
      %v1516 = vld [vmem:[%s1502 + $0x34] sm:$0xf]
      %v1517 = vld [vmem:[%s1502 + $0x38] sm:$0xf]
      %v1518 = vld [vmem:[%s1502 + $0x3c] sm:$0xf]
      %s1519 = scalar_lea.vmem %s5, 2
      %v1520 = vld [vmem:[%s1519] sm:$0x1]
      %v1522 = vlaneseq
      %v1523 = vshrl.u32 %v1522, 7
      %v1524 = vsub.s32 0, %v1523
      %v1525 = vrot.slane %v1520, %v1524
      %v1543 = vunpack.c.l.b16 %v1503
      %v1544 = vunpack.c.l.b16 %v1504
      %v1545 = vunpack.c.l.b16 %v1505
      %v1546 = vunpack.c.l.b16 %v1506
      %v1547 = vunpack.c.l.b16 %v1507
      %v1548 = vunpack.c.l.b16 %v1508
      %v1549 = vunpack.c.l.b16 %v1509
      %v1550 = vunpack.c.l.b16 %v1510
      %v1551 = vunpack.c.l.b16 %v1511
      %v1552 = vunpack.c.l.b16 %v1512
      %v1553 = vunpack.c.l.b16 %v1513
      %v1554 = vunpack.c.l.b16 %v1514
      %v1555 = vunpack.c.l.b16 %v1515
      %v1556 = vunpack.c.l.b16 %v1516
      %v1557 = vunpack.c.l.b16 %v1517
      %v1558 = vunpack.c.l.b16 %v1518
      %v1559 = vpack.c.b16 %v1544, %v1543
      %v1560 = vpack.c.b16 %v1546, %v1545
      %v1561 = vpack.c.b16 %v1548, %v1547
      %v1562 = vpack.c.b16 %v1550, %v1549
      %v1563 = vpack.c.b16 %v1552, %v1551
      %v1564 = vpack.c.b16 %v1554, %v1553
      %v1565 = vpack.c.b16 %v1556, %v1555
      %v1566 = vpack.c.b16 %v1558, %v1557
      %1575 = vmatprep.subr.bf16.mxu0 0
      %1576 = vmatpush1.bf16.msra.mxu0 %v1566
      %1577 = vmatprep.subr.bf16.mxu0 0
      %1578 = vmatpush1.bf16.msra.mxu0 %v1565
      %1579 = vmatprep.subr.bf16.mxu0 0
      %1580 = vmatpush1.bf16.msra.mxu0 %v1564
      %1581 = vmatprep.subr.bf16.mxu0 0
      %1582 = vmatpush1.bf16.msra.mxu0 %v1563
      %1583 = vmatprep.subr.bf16.mxu0 0
      %1584 = vmatpush1.bf16.msra.mxu0 %v1562
      %1585 = vmatprep.subr.bf16.mxu0 0
      %1586 = vmatpush1.bf16.msra.mxu0 %v1561
      %1587 = vmatprep.subr.bf16.mxu0 0
      %1588 = vmatpush1.bf16.msra.mxu0 %v1560
      %1589 = vmatprep.subr.bf16.mxu0 0
      %1590 = vmatpush1.bf16.msra.mxu0 %v1559
      %1591 = vmatprep.subr.bf16.mxu0 0
      %1592 = vmatpush2.bf16.msra.mxu0 0
      %1593 = vmatprep.subr.bf16.mxu0 0
      %1594 = vmatpush2.bf16.msra.mxu0 0
      %1595 = vmatprep.subr.bf16.mxu0 0
      %1596 = vmatpush2.bf16.msra.mxu0 0
      %1597 = vmatprep.subr.bf16.mxu0 0
      %1598 = vmatpush2.bf16.msra.mxu0 0
      %1599 = vmatprep.subr.bf16.mxu0 0
      %1600 = vmatpush2.bf16.msra.mxu0 0
      %1601 = vmatprep.subr.bf16.mxu0 0
      %1602 = vmatpush2.bf16.msra.mxu0 0
      %1603 = vmatprep.subr.bf16.mxu0 0
      %1604 = vmatpush2.bf16.msra.mxu0 0
      %1605 = vmatprep.subr.bf16.mxu0 0
      %1606 = vmatpush2.bf16.msra.mxu0 0
      %1607 = vmatprep.mubr.bf16.mxu0 0
      %1608 = vmatmul.mubr.bf16.gmra.mxu0 %v1501
      %v1609 = vpop.f32.mrf.mxu0
      %v1610 = vadd.f32 %v1525, %v1609
      %v1611 = vpop.f32.mrf.mxu0
      %v1612 = vpop.f32.mrf.mxu0
      %v1613 = vpop.f32.mrf.mxu0
      %1614 = vdwg.mxu0
      %v1615 = vmax.f32 %v1610, 0.0
      %v1616 = vpack.c.bf16 %v1615, %v1615
      %s1617 = scalar_lea.vmem %s6, 32
      %v1618 = vld [vmem:[%s1617] sm:$0xf]
      %v1619 = vld [vmem:[%s1617 + $0x4] sm:$0xf]
      %v1620 = vld [vmem:[%s1617 + $0x8] sm:$0xf]
      %v1621 = vld [vmem:[%s1617 + $0xc] sm:$0xf]
      %s1622 = scalar_lea.vmem %s8, 2
      %v1623 = vld [vmem:[%s1622] sm:$0x1]
      %v1625 = vlaneseq
      %v1626 = vshrl.u32 %v1625, 7
      %v1627 = vsub.s32 0, %v1626
      %v1628 = vrot.slane %v1623, %v1627
      %v1634 = vunpack.c.l.b16 %v1618
      %v1635 = vunpack.c.l.b16 %v1619
      %v1636 = vunpack.c.l.b16 %v1620
      %v1637 = vunpack.c.l.b16 %v1621
      %v1638 = vpack.c.b16 %v1635, %v1634
      %v1639 = vpack.c.b16 %v1637, %v1636
      %v1643 = vsel %vm672, %v1616, 0
      %1645 = vmatprep.subr.bf16.mxu0 0
      %1646 = vmatpush1.bf16.msra.mxu0 0
      %1647 = vmatprep.subr.bf16.mxu0 0
      %1648 = vmatpush1.bf16.msra.mxu0 0
      %1649 = vmatprep.subr.bf16.mxu0 0
      %1650 = vmatpush1.bf16.msra.mxu0 0
      %1651 = vmatprep.subr.bf16.mxu0 0
      %1652 = vmatpush1.bf16.msra.mxu0 0
      %1653 = vmatprep.subr.bf16.mxu0 0
      %1654 = vmatpush1.bf16.msra.mxu0 0
      %1655 = vmatprep.subr.bf16.mxu0 0
      %1656 = vmatpush1.bf16.msra.mxu0 0
      %1657 = vmatprep.subr.bf16.mxu0 0
      %1658 = vmatpush1.bf16.msra.mxu0 %v1639
      %1659 = vmatprep.subr.bf16.mxu0 0
      %1660 = vmatpush1.bf16.msra.mxu0 %v1638
      %1661 = vmatprep.subr.bf16.mxu0 0
      %1662 = vmatpush2.bf16.msra.mxu0 0
      %1663 = vmatprep.subr.bf16.mxu0 0
      %1664 = vmatpush2.bf16.msra.mxu0 0
      %1665 = vmatprep.subr.bf16.mxu0 0
      %1666 = vmatpush2.bf16.msra.mxu0 0
      %1667 = vmatprep.subr.bf16.mxu0 0
      %1668 = vmatpush2.bf16.msra.mxu0 0
      %1669 = vmatprep.subr.bf16.mxu0 0
      %1670 = vmatpush2.bf16.msra.mxu0 0
      %1671 = vmatprep.subr.bf16.mxu0 0
      %1672 = vmatpush2.bf16.msra.mxu0 0
      %1673 = vmatprep.subr.bf16.mxu0 0
      %1674 = vmatpush2.bf16.msra.mxu0 0
      %1675 = vmatprep.subr.bf16.mxu0 0
      %1676 = vmatpush2.bf16.msra.mxu0 0
      %1677 = vmatprep.mubr.bf16.mxu0 0
      %1678 = vmatmul.mubr.bf16.gmra.mxu0 %v1643
      %v1679 = vpop.f32.mrf.mxu0
      %v1680 = vadd.f32 %v1628, %v1679
      %v1681 = vpop.f32.mrf.mxu0
      %v1682 = vpop.f32.mrf.mxu0
      %v1683 = vpop.f32.mrf.mxu0
      %1684 = vdwg.mxu0
      %v1685 = vpack.c.bf16 %v1439, %v1439
      %s1686 = scalar_lea.vmem %s7, 32
      %v1687 = vld [vmem:[%s1686] sm:$0xf]
      %v1688 = vld [vmem:[%s1686 + $0x4] sm:$0xf]
      %v1689 = vld [vmem:[%s1686 + $0x8] sm:$0xf]
      %v1690 = vld [vmem:[%s1686 + $0xc] sm:$0xf]
      %s1691 = scalar_lea.vmem %s9, 2
      %v1692 = vld [vmem:[%s1691] sm:$0x1]
      %v1694 = vlaneseq
      %v1695 = vshrl.u32 %v1694, 7
      %v1696 = vsub.s32 0, %v1695
      %v1697 = vrot.slane %v1692, %v1696
      %v1703 = vunpack.c.l.b16 %v1687
      %v1704 = vunpack.c.l.b16 %v1688
      %v1705 = vunpack.c.l.b16 %v1689
      %v1706 = vunpack.c.l.b16 %v1690
      %v1707 = vpack.c.b16 %v1704, %v1703
      %v1708 = vpack.c.b16 %v1706, %v1705
      %v1712 = vsel %vm672, %v1685, 0
      %1714 = vmatprep.subr.bf16.mxu0 0
      %1715 = vmatpush1.bf16.msra.mxu0 0
      %1716 = vmatprep.subr.bf16.mxu0 0
      %1717 = vmatpush1.bf16.msra.mxu0 0
      %1718 = vmatprep.subr.bf16.mxu0 0
      %1719 = vmatpush1.bf16.msra.mxu0 0
      %1720 = vmatprep.subr.bf16.mxu0 0
      %1721 = vmatpush1.bf16.msra.mxu0 0
      %1722 = vmatprep.subr.bf16.mxu0 0
      %1723 = vmatpush1.bf16.msra.mxu0 0
      %1724 = vmatprep.subr.bf16.mxu0 0
      %1725 = vmatpush1.bf16.msra.mxu0 0
      %1726 = vmatprep.subr.bf16.mxu0 0
      %1727 = vmatpush1.bf16.msra.mxu0 %v1708
      %1728 = vmatprep.subr.bf16.mxu0 0
      %1729 = vmatpush1.bf16.msra.mxu0 %v1707
      %1730 = vmatprep.subr.bf16.mxu0 0
      %1731 = vmatpush2.bf16.msra.mxu0 0
      %1732 = vmatprep.subr.bf16.mxu0 0
      %1733 = vmatpush2.bf16.msra.mxu0 0
      %1734 = vmatprep.subr.bf16.mxu0 0
      %1735 = vmatpush2.bf16.msra.mxu0 0
      %1736 = vmatprep.subr.bf16.mxu0 0
      %1737 = vmatpush2.bf16.msra.mxu0 0
      %1738 = vmatprep.subr.bf16.mxu0 0
      %1739 = vmatpush2.bf16.msra.mxu0 0
      %1740 = vmatprep.subr.bf16.mxu0 0
      %1741 = vmatpush2.bf16.msra.mxu0 0
      %1742 = vmatprep.subr.bf16.mxu0 0
      %1743 = vmatpush2.bf16.msra.mxu0 0
      %1744 = vmatprep.subr.bf16.mxu0 0
      %1745 = vmatpush2.bf16.msra.mxu0 0
      %1746 = vmatprep.mubr.bf16.mxu0 0
      %1747 = vmatmul.mubr.bf16.gmra.mxu0 %v1712
      %v1748 = vpop.f32.mrf.mxu0
      %v1749 = vadd.f32 %v1697, %v1748
      %v1750 = vpop.f32.mrf.mxu0
      %v1751 = vpop.f32.mrf.mxu0
      %v1752 = vpop.f32.mrf.mxu0
      %1753 = vdwg.mxu0
      %v1754 = vadd.f32 %v1680, %v1749
      %v1755 = vxor.u32 %v1754, 2147483648
      %v1756 = vmul.f32 %v1755, 1.442695
      %v1757 = vpow.pop %v1756
      %v1758 = vadd.f32 %v1757, 1.0
      %v1759 = vrcp.pop %v1758
      %v1760 = vmul.f32 1.0, %v1759
      %1762 = vrot.lane.b32.xlu0 %v1749, 64
      %v1763 = vpop.permute.xlu0 %1762
      %v1765 = vmul.f32 %v1760, %v1763
      %1767 = vrot.lane.b32.xlu0 %v1765, 64
      %v1768 = vpop.permute.xlu0 %1767
      %v1770 = vadd.f32 %v1680, %v1768
      %v1771 = vtanh.pop %v1770
      %v1772 = vsub.f32 1.0, %v1760
      %1774 = vrot.lane.b32.xlu0 %v1771, 96
      %v1775 = vpop.permute.xlu0 %1774
      %v1777 = vmul.f32 %v1772, %v1775
      %1779 = vrot.lane.b32.xlu0 %v1439, 32
      %v1780 = vpop.permute.xlu0 %1779
      %v1782 = vmul.f32 %v1760, %v1780
      %v1783 = vadd.f32 %v1777, %v1782
      %v1784 = vpack.c.bf16 %v1783, %v1783
      %s1785 = scalar_lea.vmem %s10, 32
      %v1786 = vld [vmem:[%s1785] sm:$0xf]
      %v1787 = vld [vmem:[%s1785 + $0x4] sm:$0xf]
      %v1788 = vld [vmem:[%s1785 + $0x8] sm:$0xf]
      %v1789 = vld [vmem:[%s1785 + $0xc] sm:$0xf]
      %s1790 = scalar_lea.vmem %s11, 2
      %v1791 = vld [vmem:[%s1790] sm:$0x1]
      %v1793 = vlaneseq
      %v1794 = vshrl.u32 %v1793, 7
      %v1795 = vsub.s32 0, %v1794
      %v1796 = vrot.slane %v1791, %v1795
      %1799 = vrot.lane.b32.xlu0 %v1784, 96
      %v1800 = vpop.permute.xlu0 %1799
      %v1805 = vunpack.c.l.b16 %v1786
      %v1806 = vunpack.c.l.b16 %v1787
      %v1807 = vunpack.c.l.b16 %v1788
      %v1808 = vunpack.c.l.b16 %v1789
      %v1809 = vpack.c.b16 %v1806, %v1805
      %v1810 = vpack.c.b16 %v1808, %v1807
      %v1814 = vsel %vm672, %v1800, 0
      %1816 = vmatprep.subr.bf16.mxu0 0
      %1817 = vmatpush1.bf16.msra.mxu0 0
      %1818 = vmatprep.subr.bf16.mxu0 0
      %1819 = vmatpush1.bf16.msra.mxu0 0
      %1820 = vmatprep.subr.bf16.mxu0 0
      %1821 = vmatpush1.bf16.msra.mxu0 0
      %1822 = vmatprep.subr.bf16.mxu0 0
      %1823 = vmatpush1.bf16.msra.mxu0 0
      %1824 = vmatprep.subr.bf16.mxu0 0
      %1825 = vmatpush1.bf16.msra.mxu0 0
      %1826 = vmatprep.subr.bf16.mxu0 0
      %1827 = vmatpush1.bf16.msra.mxu0 0
      %1828 = vmatprep.subr.bf16.mxu0 0
      %1829 = vmatpush1.bf16.msra.mxu0 %v1810
      %1830 = vmatprep.subr.bf16.mxu0 0
      %1831 = vmatpush1.bf16.msra.mxu0 %v1809
      %1832 = vmatprep.subr.bf16.mxu0 0
      %1833 = vmatpush2.bf16.msra.mxu0 0
      %1834 = vmatprep.subr.bf16.mxu0 0
      %1835 = vmatpush2.bf16.msra.mxu0 0
      %1836 = vmatprep.subr.bf16.mxu0 0
      %1837 = vmatpush2.bf16.msra.mxu0 0
      %1838 = vmatprep.subr.bf16.mxu0 0
      %1839 = vmatpush2.bf16.msra.mxu0 0
      %1840 = vmatprep.subr.bf16.mxu0 0
      %1841 = vmatpush2.bf16.msra.mxu0 0
      %1842 = vmatprep.subr.bf16.mxu0 0
      %1843 = vmatpush2.bf16.msra.mxu0 0
      %1844 = vmatprep.subr.bf16.mxu0 0
      %1845 = vmatpush2.bf16.msra.mxu0 0
      %1846 = vmatprep.subr.bf16.mxu0 0
      %1847 = vmatpush2.bf16.msra.mxu0 0
      %1848 = vmatprep.mubr.bf16.mxu0 0
      %1849 = vmatmul.mubr.bf16.gmra.mxu0 %v1814
      %v1850 = vpop.f32.mrf.mxu0
      %v1851 = vadd.f32 %v1796, %v1850
      %v1852 = vpop.f32.mrf.mxu0
      %v1853 = vpop.f32.mrf.mxu0
      %v1854 = vpop.f32.mrf.mxu0
      %1855 = vdwg.mxu0
      %v1857 = vcombine.high %v1851, %v1851
      %v1859 = vunpack.c.l.s4 1966171168
      %v1860 = vunpack.c.0.s8 %v1859
      %v1861 = vlaneseq
      %v1862 = vshrl.u32 %v1861, 7
      %v1863 = vsub.s32 %v1860, %v1862
      %v1864 = vrot.slane %v1851, %v1863
      %v1866 = vunpack.c.l.s4 1966171168
      %v1867 = vunpack.c.0.s8 %v1866
      %v1868 = vlaneseq
      %v1869 = vshrl.u32 %v1868, 7
      %v1870 = vsub.s32 %v1867, %v1869
      %v1871 = vrot.slane %v1857, %v1870
      %v1872 = vcombine.high %v1864, %v1864
      %v1873 = vcombine.high %v1871, %v1871
      %v1875 = vunpack.c.l.s4 1966171168
      %v1876 = vunpack.c.0.s8 %v1875
      %v1877 = vlaneseq
      %v1878 = vshrl.u32 %v1877, 7
      %v1879 = vsub.s32 %v1876, %v1878
      %v1880 = vrot.slane %v1864, %v1879
      %v1882 = vunpack.c.l.s4 1966171168
      %v1883 = vunpack.c.0.s8 %v1882
      %v1884 = vlaneseq
      %v1885 = vshrl.u32 %v1884, 7
      %v1886 = vsub.s32 %v1883, %v1885
      %v1887 = vrot.slane %v1871, %v1886
      %v1889 = vunpack.c.l.s4 1966171168
      %v1890 = vunpack.c.0.s8 %v1889
      %v1891 = vlaneseq
      %v1892 = vshrl.u32 %v1891, 7
      %v1893 = vsub.s32 %v1890, %v1892
      %v1894 = vrot.slane %v1872, %v1893
      %v1896 = vunpack.c.l.s4 1966171168
      %v1897 = vunpack.c.0.s8 %v1896
      %v1898 = vlaneseq
      %v1899 = vshrl.u32 %v1898, 7
      %v1900 = vsub.s32 %v1897, %v1899
      %v1901 = vrot.slane %v1873, %v1900
      %v1902 = vcombine.high %v1880, %v1880
      %v1903 = vcombine.high %v1887, %v1887
      %v1904 = vcombine.high %v1894, %v1894
      %v1905 = vcombine.high %v1901, %v1901
      %1914 = vst.msk [vmem:[%s467 + $0x2] sm:$0x1] %vm941, %v1880
      %1915 = vst.msk [vmem:[%s467 + $0x6] sm:$0x1] %vm941, %v1894
      %1916 = vst.msk [vmem:[%s467 + $0xa] sm:$0x1] %vm941, %v1902
      %1917 = vst.msk [vmem:[%s467 + $0xe] sm:$0x1] %vm941, %v1904
      %1918 = vst.msk [vmem:[%s467 + $0x12] sm:$0x1] %vm941, %v1887
      %1919 = vst.msk [vmem:[%s467 + $0x16] sm:$0x1] %vm941, %v1901
      %1920 = vst.msk [vmem:[%s467 + $0x1a] sm:$0x1] %vm941, %v1903
      %1921 = vst.msk [vmem:[%s467 + $0x1e] sm:$0x1] %vm941, %v1905
      %1923 = vrot.lane.b32.xlu0 %v1783, 96
      %v1924 = vpop.permute.xlu0 %1923
      %1926 = vst.msk [vmem:[%s471] sm:$0xff] %vm672, %v1924
      %p1927 = scmp.lt.s32.totalorder %s25, 1
      %s1928 = scalar_select %p1927, %s25, 1
      %s1929 = smul.addr %s1928, 8
      %s1930 = smul.addr %s1929, 4
      %s1931 = scalar_lea.vmem %s12, %s1930
      %p1932 = scmp.lt.s32.totalorder %s25, 1
      %s1933 = scalar_select %p1932, %s25, 1
      %s1934 = smul.addr %s1933, 8
      %s1935 = scalar_lea.vmem %s13, %s1934
      // Predicated region
      $region69: #{qnet_forward.1} parent=67 // pred_check
        %p1936 = pneg %p305
      $region70: #{qnet_forward.1} parent=67 // pred_check_branch
        %1938 = sbr.rel (%p1936) target = $region72
      $region71: #{qnet_forward.1} parent=67 // pred_region
        _
      $region72: #{qnet_forward.1} parent=67 // pred_fallthru
        _
      // Predicated region
      $region73: #{qnet_forward.1} parent=67 // pred_check
        %p1939 = pneg %p331
      $region74: #{qnet_forward.1} parent=67 // pred_check_branch
        %1941 = sbr.rel (%p1939) target = $region76
      $region75: #{qnet_forward.1} parent=67 // pred_region
        _
      $region76: #{qnet_forward.1} parent=67 // pred_fallthru
        _
    $region68: #{qnet_forward.1} parent=5 // pred_fallthru
      _
    %p1942 = scmp.le.s32.totalorder 2, %s20
    // Predicated region
    $region77: #{qnet_forward.1} parent=5 // pred_check
      %p1943 = pneg %p1942
    $region78: #{qnet_forward.1} parent=5 // pred_check_branch
      %1945 = sbr.rel (%p1943) target = $region80
    $region79: #{qnet_forward.1} parent=5 // pred_region
      %s1946 = ssub.s32 %s20, 2
      // Predicated region
      $region81: #{qnet_forward.1} parent=79 // pred_check
        %p1947 = pneg %p311
      $region82: #{qnet_forward.1} parent=79 // pred_check_branch
        %1949 = sbr.rel (%p1947) target = $region84
      $region83: #{qnet_forward.1} parent=79 // pred_region
        %p1950 = scmp.lt.s32.totalorder %s26, 1
        %s1951 = scalar_select %p1950, %s26, 1
        %s1952 = smul.addr %s1951, 8
        %s1953 = smul.addr %s1952, 4
        %s1954 = scalar_lea.vmem %s12, %s1953
      $region84: #{qnet_forward.1} parent=79 // pred_fallthru
        _
      // Predicated region
      $region85: #{qnet_forward.1} parent=79 // pred_check
        %p1955 = pneg %p337
      $region86: #{qnet_forward.1} parent=79 // pred_check_branch
        %1957 = sbr.rel (%p1955) target = $region88
      $region87: #{qnet_forward.1} parent=79 // pred_region
        %p1958 = scmp.lt.s32.totalorder %s26, 1
        %s1959 = scalar_select %p1958, %s26, 1
        %s1960 = smul.addr %s1959, 8
        %s1961 = scalar_lea.vmem %s13, %s1960
      $region88: #{qnet_forward.1} parent=79 // pred_fallthru
        _
    $region80: #{qnet_forward.1} parent=5 // pred_fallthru
      _
  $region6: #{qnet_forward.1} parent=0 // loop_footer
    %s24 = sadd.s32 1, %s20
  $region7: #{qnet_forward.1} parent=0 // loop_footer_branch
    %19 = sbr.rel target = $region3
  $region8: #{qnet_forward.1} parent=0 // loop_exit
    _

</llo_original>
